<compile_context>
chip_gen: v7x
topology: tpu7x:2x2x1
jax: 0.10.0
libtpu: 0.0.40
codegen_flags: <defaults>
</compile_context>

<pallas_src>
import jax
import jax.numpy as jnp
from jax.experimental import pallas as pl
from jax.experimental.pallas import tpu as pltpu

# Logical vs. lane-aligned (padded) dims.  K of layer 1 is NOT padded.
D_IN = 784
H1, H2, H3 = 256, 64, 32
H1_P, H2_P, H3_P = 256, 128, 128
D_OUT, D_OUT_P = 10, 128


def mlp_kernel(x_ref, w1_ref, b1_ref, w2_ref, b2_ref, w3_ref, b3_ref,
               w4_ref, b4_ref, o_ref):
    # Whole 4-layer MLP for one (tb, 784) batch tile.  x arrives straight from
    # HBM as f32 (no wrapper prepass); the bf16 cast is cheap VPU work hidden
    # under the x DMA.  Matmul operands are bf16 (MXU-native), accumulation,
    # bias add and tanh stay in f32 (v5e VPU/EUP have no bf16).
    x = x_ref[...].astype(jnp.bfloat16)                             # (tb, 784)
    h = jnp.tanh(jnp.dot(x, w1_ref[...],
                         preferred_element_type=jnp.float32) + b1_ref[...])
    h = jnp.tanh(jnp.dot(h.astype(jnp.bfloat16), w2_ref[...],
                         preferred_element_type=jnp.float32) + b2_ref[...])
    h = jnp.tanh(jnp.dot(h.astype(jnp.bfloat16), w3_ref[...],
                         preferred_element_type=jnp.float32) + b3_ref[...])
    out = jnp.dot(h.astype(jnp.bfloat16), w4_ref[...],
                  preferred_element_type=jnp.float32) + b4_ref[...]
    o_ref[...] = out                          # (tb, 128) f32, lane-dense store


def _pad2(a, rows, cols):
    r, c = a.shape
    return jnp.pad(a, ((0, rows - r), (0, cols - c)))


def prepare_params(params):
    """Zero-pad params to lane-aligned shapes; weights -> bf16, biases stay f32.

    Zero padding leaves the math identical: padded weight rows/cols multiply or
    produce zeros and padded bias lanes are zero, so padded hidden lanes are
    tanh(0) = 0 and never contribute downstream.  Layer-1 K stays at 784.
    """
    return {
        "w1": _pad2(params["w1"], D_IN, H1_P).astype(jnp.bfloat16),   # (784, 256)
        "b1": _pad2(params["b1"], 1, H1_P),
        "w2": _pad2(params["w2"], H1_P, H2_P).astype(jnp.bfloat16),   # (256, 128)
        "b2": _pad2(params["b2"], 1, H2_P),
        "w3": _pad2(params["w3"], H2_P, H3_P).astype(jnp.bfloat16),   # (128, 128)
        "b3": _pad2(params["b3"], 1, H3_P),
        "w4": _pad2(params["w4"], H3_P, D_OUT_P).astype(jnp.bfloat16),# (128, 128)
        "b4": _pad2(params["b4"], 1, D_OUT_P),
    }


def _round_up(x, m):
    return ((x + m - 1) // m) * m


def _choose_tb(B, max_tb=1024, target_tiles=4):
    # Largest batch tile <= max_tb that still yields ~target_tiles grid steps,
    # so ("parallel",) megacore sharding gives both v7x TensorCores >= 2 steps
    # each; >= 512-row tiles hit ~85% of HBM roofline for large B.
    tb = min(max_tb, _round_up(pl.cdiv(B, target_tiles), 8))
    return max(tb, 8)


def _vmem_limit_bytes(tb, params_bytes):
    # Double-buffered x/out tiles + resident params (default double-buffered)
    # + f32 activation temporaries, with ~2x headroom.  Capped below v7x's
    # 64 MiB-per-TC physical budget; floor covers v5e's 16 MiB scoped default.
    working = (2 * tb * D_IN * 4
               + 2 * tb * D_OUT_P * 4
               + 2 * params_bytes
               + tb * (H1_P + H2_P + H3_P + D_OUT_P) * 4)
    return int(min(48 << 20, max(16 << 20, 2 * working + (8 << 20))))


def mlp_forward(x, params, *, max_tb=1024):
    """x: (B, 784) float32.  params: dict of w1..w4, b1..b4 (biases shaped (1, N))."""
    B, D = x.shape
    assert D == D_IN
    p = prepare_params(params)
    params_bytes = sum(int(v.size) * v.dtype.itemsize for v in p.values())

    tb = _choose_tb(B, max_tb=max_tb)
    n_tiles = pl.cdiv(B, tb)      # ragged last block handled by Pallas masking

    def resident(arr):
        # Full-array block with a constant index_map: DMA'd once, stays resident
        # in VMEM across all grid steps (~0.5 MB of bf16 weights + f32 biases).
        # NOTE: could be single-buffered via pipeline_mode=pl.Buffered(1) to
        # save ~0.5 MB more VMEM; left at the default since headroom is ample
        # at tb <= 1024 on all generations.
        return pl.BlockSpec(arr.shape, lambda i: (0, 0))

    flops = 2 * B * (D_IN * H1_P + H1_P * H2_P + H2_P * H3_P + H3_P * D_OUT_P)
    transcendentals = B * (H1_P + H2_P + H3_P)
    bytes_accessed = B * D_IN * 4 + params_bytes + B * D_OUT_P * 4

    out = pl.pallas_call(
        mlp_kernel,
        out_shape=jax.ShapeDtypeStruct((B, D_OUT_P), jnp.float32),
        grid_spec=pltpu.PrefetchScalarGridSpec(
            num_scalar_prefetch=0,
            grid=(n_tiles,),
            in_specs=[
                # x streamed straight from HBM as f32; last dim = full 784
                # (allowed since it equals the array dim), no feature padding.
                pl.BlockSpec((tb, D_IN), lambda i: (i, 0)),
                resident(p["w1"]), resident(p["b1"]),
                resident(p["w2"]), resident(p["b2"]),
                resident(p["w3"]), resident(p["b3"]),
                resident(p["w4"]), resident(p["b4"]),
            ],
            out_specs=pl.BlockSpec((tb, D_OUT_P), lambda i: (i, 0)),
        ),
        compiler_params=pltpu.CompilerParams(
            dimension_semantics=("parallel",),     # batch axis shards across v7x TCs
            vmem_limit_bytes=_vmem_limit_bytes(tb, params_bytes)),
        cost_estimate=pl.CostEstimate(
            flops=flops, transcendentals=transcendentals,
            bytes_accessed=bytes_accessed),
    )(x, p["w1"], p["b1"], p["w2"], p["b2"], p["w3"], p["b3"],
      p["w4"], p["b4"])

    return out[:, :D_OUT]


def init_params(key, layers=(256, 64, 32)):
    """Deterministic PyTorch-style init: U(-1/sqrt(fan_in), 1/sqrt(fan_in))."""
    dims = [784, layers[0], layers[1], layers[2], 10]
    params = {}
    for li in range(4):
        fan_in, fan_out = dims[li], dims[li + 1]
        key, kw, kb = jax.random.split(key, 3)
        bound = 1.0 / (fan_in ** 0.5)
        params[f"w{li+1}"] = jax.random.uniform(
            kw, (fan_in, fan_out), jnp.float32, -bound, bound)
        params[f"b{li+1}"] = jax.random.uniform(
            kb, (1, fan_out), jnp.float32, -bound, bound)
    return params


def mlp_reference(x, params):
    h = x
    for li in range(1, 4):
        h = jnp.tanh(h @ params[f"w{li}"] + params[f"b{li}"])
    return h @ params["w4"] + params["b4"]


if __name__ == "__main__":
    key = jax.random.PRNGKey(0)
    key, kx = jax.random.split(key)
    # B=300 exercises the ragged-last-block path (tile = 80 rows, grid = 4
    # steps, so both v7x TensorCores get 2 steps each).
    B = 300
    x = jax.random.normal(kx, (B, 784), jnp.float32)
    params = init_params(key)

    out = mlp_forward(x, params)
    out = jax.block_until_ready(out)

    ref = mlp_reference(x, params)
    assert out.shape == (B, 10)
    # bf16 MXU operands with f32 accumulation -> loosened tolerance vs. the
    # full-f32 reference (output scale is O(0.5)).
    assert jnp.allclose(out, ref, atol=3e-2, rtol=3e-2)
    print("KERNEL_OK")
</pallas_src>

<mosaic_0001>
module attributes {stable_mosaic.version = 11 : i64} {
  func.func @mlp_kernel(%arg0: i32, %arg1: memref<80x784xf32, #tpu.memory_space<vmem>>, %arg2: memref<784x256xbf16, #tpu.memory_space<vmem>>, %arg3: memref<1x256xf32, #tpu.memory_space<vmem>>, %arg4: memref<256x128xbf16, #tpu.memory_space<vmem>>, %arg5: memref<1x128xf32, #tpu.memory_space<vmem>>, %arg6: memref<128x128xbf16, #tpu.memory_space<vmem>>, %arg7: memref<1x128xf32, #tpu.memory_space<vmem>>, %arg8: memref<128x128xbf16, #tpu.memory_space<vmem>>, %arg9: memref<1x128xf32, #tpu.memory_space<vmem>>, %arg10: memref<80x128xf32, #tpu.memory_space<vmem>>) attributes {dimension_semantics = [#tpu.dimension_semantics<parallel>], iteration_bounds = array<i64: 4>, scalar_prefetch = 0 : i64, scratch_operands = 0 : i64, tpu.core_type = #tpu.core_type<tc>, window_params = [{transform_indices = @transform_0, window_bounds = array<i64: 80, 784>}, {pipeline_mode = #tpu.pipeline_mode<synchronous>, transform_indices = @transform_1, window_bounds = array<i64: 784, 256>}, {pipeline_mode = #tpu.pipeline_mode<synchronous>, transform_indices = @transform_2, window_bounds = array<i64: 1, 256>}, {pipeline_mode = #tpu.pipeline_mode<synchronous>, transform_indices = @transform_3, window_bounds = array<i64: 256, 128>}, {pipeline_mode = #tpu.pipeline_mode<synchronous>, transform_indices = @transform_4, window_bounds = array<i64: 1, 128>}, {pipeline_mode = #tpu.pipeline_mode<synchronous>, transform_indices = @transform_5, window_bounds = array<i64: 128, 128>}, {pipeline_mode = #tpu.pipeline_mode<synchronous>, transform_indices = @transform_6, window_bounds = array<i64: 1, 128>}, {pipeline_mode = #tpu.pipeline_mode<synchronous>, transform_indices = @transform_7, window_bounds = array<i64: 128, 128>}, {pipeline_mode = #tpu.pipeline_mode<synchronous>, transform_indices = @transform_8, window_bounds = array<i64: 1, 128>}, {transform_indices = @transform_9, window_bounds = array<i64: 80, 128>}]} {
    %c0 = arith.constant 0 : index
    %c0_0 = arith.constant 0 : index
    %0 = vector.load %arg1[%c0, %c0_0] : memref<80x784xf32, #tpu.memory_space<vmem>>, vector<80x784xf32>
    %1 = arith.truncf %0 : vector<80x784xf32> to vector<80x784xbf16>
    %c0_1 = arith.constant 0 : index
    %c0_2 = arith.constant 0 : index
    %2 = vector.load %arg2[%c0_1, %c0_2] : memref<784x256xbf16, #tpu.memory_space<vmem>>, vector<784x256xbf16>
    %cst = arith.constant dense<0.000000e+00> : vector<80x256xf32>
    %3 = tpu.matmul %1, %2, %cst {dimension_numbers = #tpu.dot_dimension_numbers<[1], [0], [0], [1], [0, 0, 1, 1], [], []>} : vector<80x784xbf16>, vector<784x256xbf16>, vector<80x256xf32> -> vector<80x256xf32>
    %c0_3 = arith.constant 0 : index
    %c0_4 = arith.constant 0 : index
    %4 = vector.load %arg3[%c0_3, %c0_4] : memref<1x256xf32, #tpu.memory_space<vmem>>, vector<1x256xf32>
    %5 = vector.broadcast %4 : vector<1x256xf32> to vector<80x256xf32>
    %6 = arith.addf %3, %5 : vector<80x256xf32>
    %7 = math.tanh %6 : vector<80x256xf32>
    %8 = arith.truncf %7 : vector<80x256xf32> to vector<80x256xbf16>
    %c0_5 = arith.constant 0 : index
    %c0_6 = arith.constant 0 : index
    %9 = vector.load %arg4[%c0_5, %c0_6] : memref<256x128xbf16, #tpu.memory_space<vmem>>, vector<256x128xbf16>
    %cst_7 = arith.constant dense<0.000000e+00> : vector<80x128xf32>
    %10 = tpu.matmul %8, %9, %cst_7 {dimension_numbers = #tpu.dot_dimension_numbers<[1], [0], [0], [1], [0, 0, 1, 1], [], []>} : vector<80x256xbf16>, vector<256x128xbf16>, vector<80x128xf32> -> vector<80x128xf32>
    %c0_8 = arith.constant 0 : index
    %c0_9 = arith.constant 0 : index
    %11 = vector.load %arg5[%c0_8, %c0_9] : memref<1x128xf32, #tpu.memory_space<vmem>>, vector<1x128xf32>
    %12 = vector.broadcast %11 : vector<1x128xf32> to vector<80x128xf32>
    %13 = arith.addf %10, %12 : vector<80x128xf32>
    %14 = math.tanh %13 : vector<80x128xf32>
    %15 = arith.truncf %14 : vector<80x128xf32> to vector<80x128xbf16>
    %c0_10 = arith.constant 0 : index
    %c0_11 = arith.constant 0 : index
    %16 = vector.load %arg6[%c0_10, %c0_11] : memref<128x128xbf16, #tpu.memory_space<vmem>>, vector<128x128xbf16>
    %cst_12 = arith.constant dense<0.000000e+00> : vector<80x128xf32>
    %17 = tpu.matmul %15, %16, %cst_12 {dimension_numbers = #tpu.dot_dimension_numbers<[1], [0], [0], [1], [0, 0, 1, 1], [], []>} : vector<80x128xbf16>, vector<128x128xbf16>, vector<80x128xf32> -> vector<80x128xf32>
    %c0_13 = arith.constant 0 : index
    %c0_14 = arith.constant 0 : index
    %18 = vector.load %arg7[%c0_13, %c0_14] : memref<1x128xf32, #tpu.memory_space<vmem>>, vector<1x128xf32>
    %19 = vector.broadcast %18 : vector<1x128xf32> to vector<80x128xf32>
    %20 = arith.addf %17, %19 : vector<80x128xf32>
    %21 = math.tanh %20 : vector<80x128xf32>
    %22 = arith.truncf %21 : vector<80x128xf32> to vector<80x128xbf16>
    %c0_15 = arith.constant 0 : index
    %c0_16 = arith.constant 0 : index
    %23 = vector.load %arg8[%c0_15, %c0_16] : memref<128x128xbf16, #tpu.memory_space<vmem>>, vector<128x128xbf16>
    %cst_17 = arith.constant dense<0.000000e+00> : vector<80x128xf32>
    %24 = tpu.matmul %22, %23, %cst_17 {dimension_numbers = #tpu.dot_dimension_numbers<[1], [0], [0], [1], [0, 0, 1, 1], [], []>} : vector<80x128xbf16>, vector<128x128xbf16>, vector<80x128xf32> -> vector<80x128xf32>
    %c0_18 = arith.constant 0 : index
    %c0_19 = arith.constant 0 : index
    %25 = vector.load %arg9[%c0_18, %c0_19] : memref<1x128xf32, #tpu.memory_space<vmem>>, vector<1x128xf32>
    %26 = vector.broadcast %25 : vector<1x128xf32> to vector<80x128xf32>
    %27 = arith.addf %24, %26 : vector<80x128xf32>
    %c0_20 = arith.constant 0 : index
    %c0_21 = arith.constant 0 : index
    %28 = vector.load %arg10[%c0_20, %c0_21] : memref<80x128xf32, #tpu.memory_space<vmem>>, vector<80x128xf32>
    tpu.vector_store %arg10[%c0_20, %c0_21], %27 {strides = array<i32>} : memref<80x128xf32, #tpu.memory_space<vmem>>, vector<80x128xf32>,
    return
  }
  func.func @transform_0(%arg0: i32) -> (i32, i32) {
    %c0_i32 = arith.constant 0 : i32
    %c0_i32_0 = arith.constant 0 : i32
    return %arg0, %c0_i32 : i32, i32
  }
  func.func @transform_1(%arg0: i32) -> (i32, i32) {
    %c0_i32 = arith.constant 0 : i32
    %c0_i32_0 = arith.constant 0 : i32
    %c0_i32_1 = arith.constant 0 : i32
    return %c0_i32, %c0_i32_0 : i32, i32
  }
  func.func @transform_2(%arg0: i32) -> (i32, i32) {
    %c0_i32 = arith.constant 0 : i32
    %c0_i32_0 = arith.constant 0 : i32
    %c0_i32_1 = arith.constant 0 : i32
    return %c0_i32, %c0_i32_0 : i32, i32
  }
  func.func @transform_3(%arg0: i32) -> (i32, i32) {
    %c0_i32 = arith.constant 0 : i32
    %c0_i32_0 = arith.constant 0 : i32
    %c0_i32_1 = arith.constant 0 : i32
    return %c0_i32, %c0_i32_0 : i32, i32
  }
  func.func @transform_4(%arg0: i32) -> (i32, i32) {
    %c0_i32 = arith.constant 0 : i32
    %c0_i32_0 = arith.constant 0 : i32
    %c0_i32_1 = arith.constant 0 : i32
    return %c0_i32, %c0_i32_0 : i32, i32
  }
  func.func @transform_5(%arg0: i32) -> (i32, i32) {
    %c0_i32 = arith.constant 0 : i32
    %c0_i32_0 = arith.constant 0 : i32
    %c0_i32_1 = arith.constant 0 : i32
    return %c0_i32, %c0_i32_0 : i32, i32
  }
  func.func @transform_6(%arg0: i32) -> (i32, i32) {
    %c0_i32 = arith.constant 0 : i32
    %c0_i32_0 = arith.constant 0 : i32
    %c0_i32_1 = arith.constant 0 : i32
    return %c0_i32, %c0_i32_0 : i32, i32
  }
  func.func @transform_7(%arg0: i32) -> (i32, i32) {
    %c0_i32 = arith.constant 0 : i32
    %c0_i32_0 = arith.constant 0 : i32
    %c0_i32_1 = arith.constant 0 : i32
    return %c0_i32, %c0_i32_0 : i32, i32
  }
  func.func @transform_8(%arg0: i32) -> (i32, i32) {
    %c0_i32 = arith.constant 0 : i32
    %c0_i32_0 = arith.constant 0 : i32
    %c0_i32_1 = arith.constant 0 : i32
    return %c0_i32, %c0_i32_0 : i32, i32
  }
  func.func @transform_9(%arg0: i32) -> (i32, i32) {
    %c0_i32 = arith.constant 0 : i32
    %c0_i32_0 = arith.constant 0 : i32
    return %arg0, %c0_i32 : i32, i32
  }
}

</mosaic_0001>

<llo_original>
// kernel: tpu_custom_call.1
$region0: #{tpu_custom_call.1}
  #allocation0 [shape = 'u32[]', space=smem, size = 0x4, offset = 0x4, fixed_abs, tag = 'smem constant byte address 0x4 - core index']
  #allocation1 [shape = 'u32[144,128]{1,0:T(1,128)}', space=vmem, size = 0x12000, scoped, tag = 'internal scratch']
  %s0 = inlined_call_operand.hbm [shape: f32[300,784], index: 0, kind: input, shape index: {}]
  %s1 = inlined_call_operand.hbm [shape: bf16[784,256], index: 1, kind: input, shape index: {}]
  %s2 = inlined_call_operand.hbm [shape: f32[1,256], index: 2, kind: input, shape index: {}]
  %s3 = inlined_call_operand.hbm [shape: bf16[256,128], index: 3, kind: input, shape index: {}]
  %s4 = inlined_call_operand.hbm [shape: f32[1,128], index: 4, kind: input, shape index: {}]
  %s5 = inlined_call_operand.hbm [shape: bf16[128,128], index: 5, kind: input, shape index: {}]
  %s6 = inlined_call_operand.hbm [shape: f32[1,128], index: 6, kind: input, shape index: {}]
  %s7 = inlined_call_operand.hbm [shape: bf16[128,128], index: 7, kind: input, shape index: {}]
  %s8 = inlined_call_operand.hbm [shape: f32[1,128], index: 8, kind: input, shape index: {}]
  %s9 = inlined_call_operand.hbm [shape: f32[300,128], index: 9, kind: output, shape index: {}]
  %s10 = sld [smem:[#allocation0]]
  $region105: #{tpu_custom_call.1} parent=0
    _
  %s12 = ssub.s32 1, %s10
  %s13 = scalar_select 0, %s12, %s10
  $region1: #{tpu_custom_call.1} parent=0
    #allocation2 [shape = 'u8[573440]{0}', space=vmem, size = 0x8c000, scoped, tag = 'input window, operand 0']
    #allocation3 [shape = 's32[2]{0}', space=sflag, size = 0x8, scoped, tag = 'scoped memory for tpu_custom_call.1']
    #allocation4 [shape = 's32[2]{0}', space=sflag, size = 0x8, scoped, tag = 'scoped memory for tpu_custom_call.1']
    #allocation5 [shape = 'u8[401408]{0}', space=vmem, size = 0x62000, scoped, tag = 'input window, operand 1, single buffered']
    #allocation6 [shape = 's32[1]{0}', space=sflag, size = 0x4, scoped, tag = 'scoped memory for tpu_custom_call.1']
    #allocation7 [shape = 'u8[1024]{0}', space=vmem, size = 0x400, scoped, tag = 'input window, operand 2, single buffered']
    #allocation8 [shape = 'u8[65536]{0}', space=vmem, size = 0x10000, scoped, tag = 'input window, operand 3, single buffered']
    #allocation9 [shape = 's32[1]{0}', space=sflag, size = 0x4, scoped, tag = 'scoped memory for tpu_custom_call.1']
    #allocation10 [shape = 'u8[512]{0}', space=vmem, size = 0x400, scoped, tag = 'input window, operand 4, single buffered']
    #allocation11 [shape = 'u8[32768]{0}', space=vmem, size = 0x8000, scoped, tag = 'input window, operand 5, single buffered']
    #allocation12 [shape = 's32[1]{0}', space=sflag, size = 0x4, scoped, tag = 'scoped memory for tpu_custom_call.1']
    #allocation13 [shape = 'u8[512]{0}', space=vmem, size = 0x400, scoped, tag = 'input window, operand 6, single buffered']
    #allocation14 [shape = 'u8[32768]{0}', space=vmem, size = 0x8000, scoped, tag = 'input window, operand 7, single buffered']
    #allocation15 [shape = 's32[1]{0}', space=sflag, size = 0x4, scoped, tag = 'scoped memory for tpu_custom_call.1']
    #allocation16 [shape = 'u8[512]{0}', space=vmem, size = 0x400, scoped, tag = 'input window, operand 8, single buffered']
    #allocation17 [shape = 'u8[81920]{0}', space=vmem, size = 0x14000, scoped, tag = 'output window, operand 0']
    %14 = vsyncpa [#allocation3], 0
    %s15 = scalar_lea.sflag [#allocation3], 1
    %16 = vsyncpa %s15, 0
    %17 = vsyncpa [#allocation6], 0
    %18 = vsyncpa [#allocation9], 0
    %19 = vsyncpa [#allocation12], 0
    %20 = vsyncpa [#allocation15], 0
    %21 = vsyncpa [#allocation4], 0
    %s22 = scalar_lea.sflag [#allocation4], 1
    %23 = vsyncpa %s22, 0
    loop: start=0, step=1, limit=6
    $region2: #{tpu_custom_call.1} parent=1 // loop_pre_header
      _
    $region3: #{tpu_custom_call.1} parent=1 // loop_header
      %s25 = sphi 0, %s29
      %p26 = scmp.ge.s32.totalorder %s25, 6
      %s35 = sphi 0, %s37
      %s38 = sphi 0, %s35
      %s39 = sphi 0, %s38
      %s55 = sphi 0, %s39
      %s59 = sphi 0, %s59
      %s61 = sphi 0, %s59
      %s62 = sphi 0, %s61
      %s76 = sphi 0, %s62
      %s80 = sphi 0, %s80
      %s82 = sphi 0, %s80
      %s83 = sphi 0, %s82
      %s97 = sphi 0, %s83
      %s101 = sphi 0, %s101
      %s103 = sphi 0, %s101
      %s104 = sphi 0, %s103
      %s118 = sphi 0, %s104
      %s122 = sphi 0, %s122
      %s124 = sphi 0, %s122
      %s125 = sphi 0, %s124
      %s139 = sphi 0, %s125
      %s143 = sphi 0, %s143
      %s145 = sphi 0, %s143
      %s146 = sphi 0, %s145
      %s160 = sphi 0, %s146
      %s164 = sphi 0, %s164
      %s166 = sphi 0, %s164
      %s167 = sphi 0, %s166
      %s181 = sphi 0, %s167
      %s185 = sphi 0, %s185
      %s187 = sphi 0, %s185
      %s188 = sphi 0, %s187
      %s202 = sphi 0, %s188
      %s206 = sphi 0, %s206
      %s208 = sphi 0, %s206
      %s209 = sphi 0, %s208
      %s223 = sphi 0, %s209
      %s229 = sphi 0, %s231
      %s232 = sphi 0, %s229
      %s233 = sphi 0, %s232
      %s249 = sphi 0, %s233
    $region4: #{tpu_custom_call.1} parent=1 // loop_header_branch
      %28 = sbr.rel (%p26) target = $region8
    $region5: #{tpu_custom_call.1} parent=1 // loop_body
      %s30 = ssub.s32 %s25, 1
      %s31 = ssub.s32 %s25, 2
      %s32 = sadd.s32 %s25, 1
      %s33 = ssub.s32 %s25, %s32
      %p34 = scmp.eq.s32.totalorder %s33, 0
      %s36 = sadd.s32 %s35, 1
      %s37 = scalar_select %p34, %s35, %s36
      %p40 = pneg %p34
      %p41 = scmp.eq.s32.totalorder %s25, 3
      %p42 = por %p40, %p41
      %p43 = scmp.ne.s32.totalorder %s35, %s38
      %p44 = scmp.eq.s32.totalorder %s25, 0
      %p45 = por %p43, %p44
      %p46 = scmp.ne.s32.totalorder %s35, %s38
      %p47 = scmp.eq.s32.totalorder %s30, 3
      %p48 = por %p46, %p47
      %p49 = scmp.ne.s32.totalorder %s38, %s39
      %p50 = scmp.eq.s32.totalorder %s30, 0
      %p51 = por %p49, %p50
      %p52 = scmp.ne.s32.totalorder %s38, %s39
      %p53 = scmp.eq.s32.totalorder %s31, 3
      %p54 = por %p52, %p53
      %p56 = scmp.ne.s32.totalorder %s39, %s55
      %p57 = scmp.eq.s32.totalorder %s31, 0
      %p58 = por %p56, %p57
      %s60 = sadd.s32 %s59, 1
      %p63 = scmp.eq.s32.totalorder %s25, 3
      %p64 = scmp.ne.s32.totalorder %s59, %s61
      %p65 = scmp.eq.s32.totalorder %s25, 0
      %p66 = por %p64, %p65
      %p67 = scmp.ne.s32.totalorder %s59, %s61
      %p68 = scmp.eq.s32.totalorder %s30, 3
      %p69 = por %p67, %p68
      %p70 = scmp.ne.s32.totalorder %s61, %s62
      %p71 = scmp.eq.s32.totalorder %s30, 0
      %p72 = por %p70, %p71
      %p73 = scmp.ne.s32.totalorder %s61, %s62
      %p74 = scmp.eq.s32.totalorder %s31, 3
      %p75 = por %p73, %p74
      %p77 = scmp.ne.s32.totalorder %s62, %s76
      %p78 = scmp.eq.s32.totalorder %s31, 0
      %p79 = por %p77, %p78
      %s81 = sadd.s32 %s80, 1
      %p84 = scmp.eq.s32.totalorder %s25, 3
      %p85 = scmp.ne.s32.totalorder %s80, %s82
      %p86 = scmp.eq.s32.totalorder %s25, 0
      %p87 = por %p85, %p86
      %p88 = scmp.ne.s32.totalorder %s80, %s82
      %p89 = scmp.eq.s32.totalorder %s30, 3
      %p90 = por %p88, %p89
      %p91 = scmp.ne.s32.totalorder %s82, %s83
      %p92 = scmp.eq.s32.totalorder %s30, 0
      %p93 = por %p91, %p92
      %p94 = scmp.ne.s32.totalorder %s82, %s83
      %p95 = scmp.eq.s32.totalorder %s31, 3
      %p96 = por %p94, %p95
      %p98 = scmp.ne.s32.totalorder %s83, %s97
      %p99 = scmp.eq.s32.totalorder %s31, 0
      %p100 = por %p98, %p99
      %s102 = sadd.s32 %s101, 1
      %p105 = scmp.eq.s32.totalorder %s25, 3
      %p106 = scmp.ne.s32.totalorder %s101, %s103
      %p107 = scmp.eq.s32.totalorder %s25, 0
      %p108 = por %p106, %p107
      %p109 = scmp.ne.s32.totalorder %s101, %s103
      %p110 = scmp.eq.s32.totalorder %s30, 3
      %p111 = por %p109, %p110
      %p112 = scmp.ne.s32.totalorder %s103, %s104
      %p113 = scmp.eq.s32.totalorder %s30, 0
      %p114 = por %p112, %p113
      %p115 = scmp.ne.s32.totalorder %s103, %s104
      %p116 = scmp.eq.s32.totalorder %s31, 3
      %p117 = por %p115, %p116
      %p119 = scmp.ne.s32.totalorder %s104, %s118
      %p120 = scmp.eq.s32.totalorder %s31, 0
      %p121 = por %p119, %p120
      %s123 = sadd.s32 %s122, 1
      %p126 = scmp.eq.s32.totalorder %s25, 3
      %p127 = scmp.ne.s32.totalorder %s122, %s124
      %p128 = scmp.eq.s32.totalorder %s25, 0
      %p129 = por %p127, %p128
      %p130 = scmp.ne.s32.totalorder %s122, %s124
      %p131 = scmp.eq.s32.totalorder %s30, 3
      %p132 = por %p130, %p131
      %p133 = scmp.ne.s32.totalorder %s124, %s125
      %p134 = scmp.eq.s32.totalorder %s30, 0
      %p135 = por %p133, %p134
      %p136 = scmp.ne.s32.totalorder %s124, %s125
      %p137 = scmp.eq.s32.totalorder %s31, 3
      %p138 = por %p136, %p137
      %p140 = scmp.ne.s32.totalorder %s125, %s139
      %p141 = scmp.eq.s32.totalorder %s31, 0
      %p142 = por %p140, %p141
      %s144 = sadd.s32 %s143, 1
      %p147 = scmp.eq.s32.totalorder %s25, 3
      %p148 = scmp.ne.s32.totalorder %s143, %s145
      %p149 = scmp.eq.s32.totalorder %s25, 0
      %p150 = por %p148, %p149
      %p151 = scmp.ne.s32.totalorder %s143, %s145
      %p152 = scmp.eq.s32.totalorder %s30, 3
      %p153 = por %p151, %p152
      %p154 = scmp.ne.s32.totalorder %s145, %s146
      %p155 = scmp.eq.s32.totalorder %s30, 0
      %p156 = por %p154, %p155
      %p157 = scmp.ne.s32.totalorder %s145, %s146
      %p158 = scmp.eq.s32.totalorder %s31, 3
      %p159 = por %p157, %p158
      %p161 = scmp.ne.s32.totalorder %s146, %s160
      %p162 = scmp.eq.s32.totalorder %s31, 0
      %p163 = por %p161, %p162
      %s165 = sadd.s32 %s164, 1
      %p168 = scmp.eq.s32.totalorder %s25, 3
      %p169 = scmp.ne.s32.totalorder %s164, %s166
      %p170 = scmp.eq.s32.totalorder %s25, 0
      %p171 = por %p169, %p170
      %p172 = scmp.ne.s32.totalorder %s164, %s166
      %p173 = scmp.eq.s32.totalorder %s30, 3
      %p174 = por %p172, %p173
      %p175 = scmp.ne.s32.totalorder %s166, %s167
      %p176 = scmp.eq.s32.totalorder %s30, 0
      %p177 = por %p175, %p176
      %p178 = scmp.ne.s32.totalorder %s166, %s167
      %p179 = scmp.eq.s32.totalorder %s31, 3
      %p180 = por %p178, %p179
      %p182 = scmp.ne.s32.totalorder %s167, %s181
      %p183 = scmp.eq.s32.totalorder %s31, 0
      %p184 = por %p182, %p183
      %s186 = sadd.s32 %s185, 1
      %p189 = scmp.eq.s32.totalorder %s25, 3
      %p190 = scmp.ne.s32.totalorder %s185, %s187
      %p191 = scmp.eq.s32.totalorder %s25, 0
      %p192 = por %p190, %p191
      %p193 = scmp.ne.s32.totalorder %s185, %s187
      %p194 = scmp.eq.s32.totalorder %s30, 3
      %p195 = por %p193, %p194
      %p196 = scmp.ne.s32.totalorder %s187, %s188
      %p197 = scmp.eq.s32.totalorder %s30, 0
      %p198 = por %p196, %p197
      %p199 = scmp.ne.s32.totalorder %s187, %s188
      %p200 = scmp.eq.s32.totalorder %s31, 3
      %p201 = por %p199, %p200
      %p203 = scmp.ne.s32.totalorder %s188, %s202
      %p204 = scmp.eq.s32.totalorder %s31, 0
      %p205 = por %p203, %p204
      %s207 = sadd.s32 %s206, 1
      %p210 = scmp.eq.s32.totalorder %s25, 3
      %p211 = scmp.ne.s32.totalorder %s206, %s208
      %p212 = scmp.eq.s32.totalorder %s25, 0
      %p213 = por %p211, %p212
      %p214 = scmp.ne.s32.totalorder %s206, %s208
      %p215 = scmp.eq.s32.totalorder %s30, 3
      %p216 = por %p214, %p215
      %p217 = scmp.ne.s32.totalorder %s208, %s209
      %p218 = scmp.eq.s32.totalorder %s30, 0
      %p219 = por %p217, %p218
      %p220 = scmp.ne.s32.totalorder %s208, %s209
      %p221 = scmp.eq.s32.totalorder %s31, 3
      %p222 = por %p220, %p221
      %p224 = scmp.ne.s32.totalorder %s209, %s223
      %p225 = scmp.eq.s32.totalorder %s31, 0
      %p226 = por %p224, %p225
      %s227 = ssub.s32 %s25, %s32
      %p228 = scmp.eq.s32.totalorder %s227, 0
      %s230 = sadd.s32 %s229, 1
      %s231 = scalar_select %p228, %s229, %s230
      %p234 = pneg %p228
      %p235 = scmp.eq.s32.totalorder %s25, 3
      %p236 = por %p234, %p235
      %p237 = scmp.ne.s32.totalorder %s229, %s232
      %p238 = scmp.eq.s32.totalorder %s25, 0
      %p239 = por %p237, %p238
      %p240 = scmp.ne.s32.totalorder %s229, %s232
      %p241 = scmp.eq.s32.totalorder %s30, 3
      %p242 = por %p240, %p241
      %p243 = scmp.ne.s32.totalorder %s232, %s233
      %p244 = scmp.eq.s32.totalorder %s30, 0
      %p245 = por %p243, %p244
      %p246 = scmp.ne.s32.totalorder %s232, %s233
      %p247 = scmp.eq.s32.totalorder %s31, 3
      %p248 = por %p246, %p247
      %p250 = scmp.ne.s32.totalorder %s233, %s249
      %p251 = scmp.eq.s32.totalorder %s31, 0
      %p252 = por %p250, %p251
      %p253 = scmp.le.s32.totalorder 1, %s25
      %p254 = scmp.lt.s32.totalorder %s25, 5
      %p255 = pnand %p253, %p254
      %p256 = pneg %p255
      // Predicated region
      $region9: #{tpu_custom_call.1} parent=5 // pred_check
        _
      $region10: #{tpu_custom_call.1} parent=5 // pred_check_branch
        %258 = sbr.rel (%p255) target = $region12
      $region11: #{tpu_custom_call.1} parent=5 // pred_region
        %s259 = ssub.s32 %s25, 1
        // Predicated region
        $region13: #{tpu_custom_call.1} parent=11 // pred_check
          %p260 = pneg %p72
        $region14: #{tpu_custom_call.1} parent=11 // pred_check_branch
          %262 = sbr.rel (%p260) target = $region16
        $region15: #{tpu_custom_call.1} parent=11 // pred_region
          %s264 = ssub.s32 12544, 12544
          %265 = vsyncadd [#allocation6], %s264
          %s266 = sshll.u32 [#allocation5], 4
          %s267 = int_to_ptr.vmem [resolvable:$true] %s266
          %272 = dma.hbm_to_vmem [thread:$0]  %s1, 12544, %s267, [#allocation6], 128, 128, 8
        $region16: #{tpu_custom_call.1} parent=11 // pred_fallthru
          _
        // Predicated region
        $region17: #{tpu_custom_call.1} parent=11 // pred_check
          %p273 = pneg %p93
        $region18: #{tpu_custom_call.1} parent=11 // pred_check_branch
          %275 = sbr.rel (%p273) target = $region20
        $region19: #{tpu_custom_call.1} parent=11 // pred_region
          %s277 = ssub.s32 32, 32
          %278 = vsyncadd [#allocation6], %s277
          %s280 = sshll.u32 [#allocation7], 4
          %s281 = int_to_ptr.vmem [resolvable:$true] %s280
          %283 = dma.hbm_to_vmem [thread:$0]  %s2, 32, %s281, [#allocation6]
        $region20: #{tpu_custom_call.1} parent=11 // pred_fallthru
          _
        // Predicated region
        $region21: #{tpu_custom_call.1} parent=11 // pred_check
          %p284 = pneg %p114
        $region22: #{tpu_custom_call.1} parent=11 // pred_check_branch
          %286 = sbr.rel (%p284) target = $region24
        $region23: #{tpu_custom_call.1} parent=11 // pred_region
          %s288 = ssub.s32 2048, 2048
          %289 = vsyncadd [#allocation9], %s288
          %s290 = sshll.u32 [#allocation8], 4
          %s291 = int_to_ptr.vmem [resolvable:$true] %s290
          %296 = dma.hbm_to_vmem [thread:$0]  %s3, 2048, %s291, [#allocation9], 64, 64, 4
        $region24: #{tpu_custom_call.1} parent=11 // pred_fallthru
          _
        // Predicated region
        $region25: #{tpu_custom_call.1} parent=11 // pred_check
          %p297 = pneg %p135
        $region26: #{tpu_custom_call.1} parent=11 // pred_check_branch
          %299 = sbr.rel (%p297) target = $region28
        $region27: #{tpu_custom_call.1} parent=11 // pred_region
          %s301 = ssub.s32 16, 16
          %302 = vsyncadd [#allocation9], %s301
          %s304 = sshll.u32 [#allocation10], 4
          %s305 = int_to_ptr.vmem [resolvable:$true] %s304
          %307 = dma.hbm_to_vmem [thread:$0]  %s4, 16, %s305, [#allocation9]
        $region28: #{tpu_custom_call.1} parent=11 // pred_fallthru
          _
        // Predicated region
        $region29: #{tpu_custom_call.1} parent=11 // pred_check
          %p308 = pneg %p156
        $region30: #{tpu_custom_call.1} parent=11 // pred_check_branch
          %310 = sbr.rel (%p308) target = $region32
        $region31: #{tpu_custom_call.1} parent=11 // pred_region
          %s312 = ssub.s32 1024, 1024
          %313 = vsyncadd [#allocation12], %s312
          %s314 = sshll.u32 [#allocation11], 4
          %s315 = int_to_ptr.vmem [resolvable:$true] %s314
          %320 = dma.hbm_to_vmem [thread:$0]  %s5, 1024, %s315, [#allocation12], 64, 64, 4
        $region32: #{tpu_custom_call.1} parent=11 // pred_fallthru
          _
        // Predicated region
        $region33: #{tpu_custom_call.1} parent=11 // pred_check
          %p321 = pneg %p177
        $region34: #{tpu_custom_call.1} parent=11 // pred_check_branch
          %323 = sbr.rel (%p321) target = $region36
        $region35: #{tpu_custom_call.1} parent=11 // pred_region
          %s325 = ssub.s32 16, 16
          %326 = vsyncadd [#allocation12], %s325
          %s328 = sshll.u32 [#allocation13], 4
          %s329 = int_to_ptr.vmem [resolvable:$true] %s328
          %331 = dma.hbm_to_vmem [thread:$0]  %s6, 16, %s329, [#allocation12]
        $region36: #{tpu_custom_call.1} parent=11 // pred_fallthru
          _
        // Predicated region
        $region37: #{tpu_custom_call.1} parent=11 // pred_check
          %p332 = pneg %p198
        $region38: #{tpu_custom_call.1} parent=11 // pred_check_branch
          %334 = sbr.rel (%p332) target = $region40
        $region39: #{tpu_custom_call.1} parent=11 // pred_region
          %s336 = ssub.s32 1024, 1024
          %337 = vsyncadd [#allocation15], %s336
          %s338 = sshll.u32 [#allocation14], 4
          %s339 = int_to_ptr.vmem [resolvable:$true] %s338
          %344 = dma.hbm_to_vmem [thread:$0]  %s7, 1024, %s339, [#allocation15], 64, 64, 4
        $region40: #{tpu_custom_call.1} parent=11 // pred_fallthru
          _
        // Predicated region
        $region41: #{tpu_custom_call.1} parent=11 // pred_check
          %p345 = pneg %p219
        $region42: #{tpu_custom_call.1} parent=11 // pred_check_branch
          %347 = sbr.rel (%p345) target = $region44
        $region43: #{tpu_custom_call.1} parent=11 // pred_region
          %s349 = ssub.s32 16, 16
          %350 = vsyncadd [#allocation15], %s349
          %s352 = sshll.u32 [#allocation16], 4
          %s353 = int_to_ptr.vmem [resolvable:$true] %s352
          %355 = dma.hbm_to_vmem [thread:$0]  %s8, 16, %s353, [#allocation15]
        $region44: #{tpu_custom_call.1} parent=11 // pred_fallthru
          _
      $region12: #{tpu_custom_call.1} parent=5 // pred_fallthru
        _
      %p356 = scmp.lt.s32.totalorder %s25, 4
      // Predicated region
      $region45: #{tpu_custom_call.1} parent=5 // pred_check
        %p357 = pneg %p356
      $region46: #{tpu_custom_call.1} parent=5 // pred_check_branch
        %359 = sbr.rel (%p357) target = $region48
      $region47: #{tpu_custom_call.1} parent=5 // pred_region
        // Predicated region
        $region49: #{tpu_custom_call.1} parent=47 // pred_check
          %p360 = pneg %p45
        $region50: #{tpu_custom_call.1} parent=47 // pred_check_branch
          %362 = sbr.rel (%p360) target = $region52
        $region51: #{tpu_custom_call.1} parent=47 // pred_region
          %s363 = sand.u32 %s35, 1
          %s364 = scalar_lea.sflag [#allocation3], %s363
          %s365 = sand.u32 %s35, 1
          %s366 = smul.addr %s365, 560
          %s367 = scalar_lea.vmem [#allocation2], %s366
          %s368 = smul.u32 10, %s25
          %s369 = ssub.s32 38, %s368
          %p370 = scmp.lt.s32.totalorder %s369, 10
          %s371 = scalar_select %p370, %s369, 10
          %s372 = smul.u32 128, %s371
          %s373 = smul.u32 %s372, 7
          %s375 = ssub.s32 8960, %s373
          %376 = vsyncadd %s364, %s375
          %p377 = scmp.ne.s32.totalorder 0, %s373
          %s378 = smul.addr %s368, 7
          %s379 = smul.addr %s378, 128
          %s380 = scalar_lea.hbm %s0, %s379
          %s381 = smul.u32 56, %s371
          %s382 = sshll.u32 %s367, 4
          %s383 = int_to_ptr.vmem [resolvable:$true] %s382
          %s384 = sshll.u32 %s381, 4
          %388 = dma.hbm_to_vmem [thread:$0]  (%p377), %s380, %s384, %s383, %s364, 896, 896, 56
        $region52: #{tpu_custom_call.1} parent=47 // pred_fallthru
          _
      $region48: #{tpu_custom_call.1} parent=5 // pred_fallthru
        _
      %p389 = scmp.le.s32.totalorder 1, %s25
      %p390 = scmp.lt.s32.totalorder %s25, 5
      %p391 = pnand %p389, %p390
      %p392 = pneg %p391
      // Predicated region
      $region53: #{tpu_custom_call.1} parent=5 // pred_check
        _
      $region54: #{tpu_custom_call.1} parent=5 // pred_check_branch
        %394 = sbr.rel (%p391) target = $region56
      $region55: #{tpu_custom_call.1} parent=5 // pred_region
        %s395 = ssub.s32 %s25, 1
        %s396 = sand.u32 %s38, 1
        %s397 = scalar_lea.sflag [#allocation3], %s396
        %s398 = sand.u32 %s38, 1
        %s399 = smul.addr %s398, 560
        %s400 = scalar_lea.vmem [#allocation2], %s399
        // Predicated region
        $region57: #{tpu_custom_call.1} parent=55 // pred_check
          %p401 = pneg %p51
        $region58: #{tpu_custom_call.1} parent=55 // pred_check_branch
          %403 = sbr.rel (%p401) target = $region60
        $region59: #{tpu_custom_call.1} parent=55 // pred_region
          %404 = dma.done %s397, 8960
        $region60: #{tpu_custom_call.1} parent=55 // pred_fallthru
          _
        // Predicated region
        $region61: #{tpu_custom_call.1} parent=55 // pred_check
          %p405 = pneg %p72
        $region62: #{tpu_custom_call.1} parent=55 // pred_check_branch
          %407 = sbr.rel (%p405) target = $region64
        $region63: #{tpu_custom_call.1} parent=55 // pred_region
          %408 = dma.done [#allocation6], 12544
        $region64: #{tpu_custom_call.1} parent=55 // pred_fallthru
          _
        // Predicated region
        $region65: #{tpu_custom_call.1} parent=55 // pred_check
          %p409 = pneg %p93
        $region66: #{tpu_custom_call.1} parent=55 // pred_check_branch
          %411 = sbr.rel (%p409) target = $region68
        $region67: #{tpu_custom_call.1} parent=55 // pred_region
          %412 = dma.done [#allocation6], 32
        $region68: #{tpu_custom_call.1} parent=55 // pred_fallthru
          _
        // Predicated region
        $region69: #{tpu_custom_call.1} parent=55 // pred_check
          %p413 = pneg %p114
        $region70: #{tpu_custom_call.1} parent=55 // pred_check_branch
          %415 = sbr.rel (%p413) target = $region72
        $region71: #{tpu_custom_call.1} parent=55 // pred_region
          %416 = dma.done [#allocation9], 2048
        $region72: #{tpu_custom_call.1} parent=55 // pred_fallthru
          _
        // Predicated region
        $region73: #{tpu_custom_call.1} parent=55 // pred_check
          %p417 = pneg %p135
        $region74: #{tpu_custom_call.1} parent=55 // pred_check_branch
          %419 = sbr.rel (%p417) target = $region76
        $region75: #{tpu_custom_call.1} parent=55 // pred_region
          %420 = dma.done [#allocation9], 16
        $region76: #{tpu_custom_call.1} parent=55 // pred_fallthru
          _
        // Predicated region
        $region77: #{tpu_custom_call.1} parent=55 // pred_check
          %p421 = pneg %p156
        $region78: #{tpu_custom_call.1} parent=55 // pred_check_branch
          %423 = sbr.rel (%p421) target = $region80
        $region79: #{tpu_custom_call.1} parent=55 // pred_region
          %424 = dma.done [#allocation12], 1024
        $region80: #{tpu_custom_call.1} parent=55 // pred_fallthru
          _
        // Predicated region
        $region81: #{tpu_custom_call.1} parent=55 // pred_check
          %p425 = pneg %p177
        $region82: #{tpu_custom_call.1} parent=55 // pred_check_branch
          %427 = sbr.rel (%p425) target = $region84
        $region83: #{tpu_custom_call.1} parent=55 // pred_region
          %428 = dma.done [#allocation12], 16
        $region84: #{tpu_custom_call.1} parent=55 // pred_fallthru
          _
        // Predicated region
        $region85: #{tpu_custom_call.1} parent=55 // pred_check
          %p429 = pneg %p198
        $region86: #{tpu_custom_call.1} parent=55 // pred_check_branch
          %431 = sbr.rel (%p429) target = $region88
        $region87: #{tpu_custom_call.1} parent=55 // pred_region
          %432 = dma.done [#allocation15], 1024
        $region88: #{tpu_custom_call.1} parent=55 // pred_fallthru
          _
        // Predicated region
        $region89: #{tpu_custom_call.1} parent=55 // pred_check
          %p433 = pneg %p219
        $region90: #{tpu_custom_call.1} parent=55 // pred_check_branch
          %435 = sbr.rel (%p433) target = $region92
        $region91: #{tpu_custom_call.1} parent=55 // pred_region
          %436 = dma.done [#allocation15], 16
        $region92: #{tpu_custom_call.1} parent=55 // pred_fallthru
          _
        %s437 = sand.u32 %s38, 1
        %s438 = scalar_lea.sflag [#allocation3], %s437
        %s439 = sand.u32 %s38, 1
        %s440 = smul.addr %s439, 560
        %s441 = scalar_lea.vmem [#allocation2], %s440
        %p442 = pneg %p51
        %p443 = pneg %p48
        %p444 = pneg %p72
        %p445 = pneg %p69
        %p446 = pneg %p93
        %p447 = pneg %p90
        %p448 = pneg %p114
        %p449 = pneg %p111
        %p450 = pneg %p135
        %p451 = pneg %p132
        %p452 = pneg %p156
        %p453 = pneg %p153
        %p454 = pneg %p177
        %p455 = pneg %p174
        %p456 = pneg %p198
        %p457 = pneg %p195
        %p458 = pneg %p219
        %p459 = pneg %p216
        %p460 = pneg %p245
        %p461 = pneg %p242
        %s462 = sand.u32 %s232, 1
        %s463 = scalar_lea.sflag [#allocation4], %s462
        %s464 = sand.u32 %s232, 1
        %s465 = smul.addr %s464, 80
        %s466 = scalar_lea.vmem [#allocation17], %s465
        %s467 = smul.u32 10, %s30
        %s468 = ssub.s32 38, %s467
        %p469 = scmp.lt.s32.totalorder %s468, 10
        %s470 = scalar_select %p469, %s468, 10
        %s471 = smul.u32 128, %s470
        %s472 = smul.u32 %s471, 7
        %s473 = smul.u32 10, %s30
        %s474 = ssub.s32 38, %s473
        %p475 = scmp.lt.s32.totalorder %s474, 10
        %s476 = scalar_select %p475, %s474, 10
        %s477 = smul.u32 128, %s476
        %v479 = vld [vmem:[%s400] sm:$0xff]
        %v480 = vld [vmem:[%s400 + $0x8] sm:$0xff]
        %v481 = vld [vmem:[%s400 + $0x10] sm:$0xff]
        %v482 = vld [vmem:[%s400 + $0x18] sm:$0xff]
        %v483 = vld [vmem:[%s400 + $0x20] sm:$0xff]
        %v484 = vld [vmem:[%s400 + $0x28] sm:$0xff]
        %v485 = vld [vmem:[%s400 + $0x30] sm:$0xff]
        %v486 = vld [vmem:[%s400 + $0x38] sm:$0xff]
        %v487 = vld [vmem:[%s400 + $0x40] sm:$0xff]
        %v488 = vld [vmem:[%s400 + $0x48] sm:$0xff]
        %v489 = vld [vmem:[%s400 + $0x50] sm:$0xff]
        %v490 = vld [vmem:[%s400 + $0x58] sm:$0xff]
        %v491 = vld [vmem:[%s400 + $0x60] sm:$0xff]
        %v492 = vld [vmem:[%s400 + $0x68] sm:$0xff]
        %v493 = vld [vmem:[%s400 + $0x70] sm:$0xff]
        %v494 = vld [vmem:[%s400 + $0x78] sm:$0xff]
        %v495 = vld [vmem:[%s400 + $0x80] sm:$0xff]
        %v496 = vld [vmem:[%s400 + $0x88] sm:$0xff]
        %v497 = vld [vmem:[%s400 + $0x90] sm:$0xff]
        %v498 = vld [vmem:[%s400 + $0x98] sm:$0xff]
        %v499 = vld [vmem:[%s400 + $0xa0] sm:$0xff]
        %v500 = vld [vmem:[%s400 + $0xa8] sm:$0xff]
        %v501 = vld [vmem:[%s400 + $0xb0] sm:$0xff]
        %v502 = vld [vmem:[%s400 + $0xb8] sm:$0xff]
        %v503 = vld [vmem:[%s400 + $0xc0] sm:$0xff]
        %v504 = vld [vmem:[%s400 + $0xc8] sm:$0xff]
        %v505 = vld [vmem:[%s400 + $0xd0] sm:$0xff]
        %v506 = vld [vmem:[%s400 + $0xd8] sm:$0xff]
        %v507 = vld [vmem:[%s400 + $0xe0] sm:$0xff]
        %v508 = vld [vmem:[%s400 + $0xe8] sm:$0xff]
        %v509 = vld [vmem:[%s400 + $0xf0] sm:$0xff]
        %v510 = vld [vmem:[%s400 + $0xf8] sm:$0xff]
        %v511 = vld [vmem:[%s400 + $0x100] sm:$0xff]
        %v512 = vld [vmem:[%s400 + $0x108] sm:$0xff]
        %v513 = vld [vmem:[%s400 + $0x110] sm:$0xff]
        %v514 = vld [vmem:[%s400 + $0x118] sm:$0xff]
        %v515 = vld [vmem:[%s400 + $0x120] sm:$0xff]
        %v516 = vld [vmem:[%s400 + $0x128] sm:$0xff]
        %v517 = vld [vmem:[%s400 + $0x130] sm:$0xff]
        %v518 = vld [vmem:[%s400 + $0x138] sm:$0xff]
        %v519 = vld [vmem:[%s400 + $0x140] sm:$0xff]
        %v520 = vld [vmem:[%s400 + $0x148] sm:$0xff]
        %v521 = vld [vmem:[%s400 + $0x150] sm:$0xff]
        %v522 = vld [vmem:[%s400 + $0x158] sm:$0xff]
        %v523 = vld [vmem:[%s400 + $0x160] sm:$0xff]
        %v524 = vld [vmem:[%s400 + $0x168] sm:$0xff]
        %v525 = vld [vmem:[%s400 + $0x170] sm:$0xff]
        %v526 = vld [vmem:[%s400 + $0x178] sm:$0xff]
        %v527 = vld [vmem:[%s400 + $0x180] sm:$0xff]
        %v528 = vld [vmem:[%s400 + $0x188] sm:$0xff]
        %v529 = vld [vmem:[%s400 + $0x190] sm:$0xff]
        %v530 = vld [vmem:[%s400 + $0x198] sm:$0xff]
        %v531 = vld [vmem:[%s400 + $0x1a0] sm:$0xff]
        %v532 = vld [vmem:[%s400 + $0x1a8] sm:$0xff]
        %v533 = vld [vmem:[%s400 + $0x1b0] sm:$0xff]
        %v534 = vld [vmem:[%s400 + $0x1b8] sm:$0xff]
        %v535 = vld [vmem:[%s400 + $0x1c0] sm:$0xff]
        %v536 = vld [vmem:[%s400 + $0x1c8] sm:$0xff]
        %v537 = vld [vmem:[%s400 + $0x1d0] sm:$0xff]
        %v538 = vld [vmem:[%s400 + $0x1d8] sm:$0xff]
        %v539 = vld [vmem:[%s400 + $0x1e0] sm:$0xff]
        %v540 = vld [vmem:[%s400 + $0x1e8] sm:$0xff]
        %v541 = vld [vmem:[%s400 + $0x1f0] sm:$0xff]
        %v542 = vld [vmem:[%s400 + $0x1f8] sm:$0xff]
        %v543 = vld [vmem:[%s400 + $0x200] sm:$0xff]
        %v544 = vld [vmem:[%s400 + $0x208] sm:$0xff]
        %v545 = vld [vmem:[%s400 + $0x210] sm:$0xff]
        %v546 = vld [vmem:[%s400 + $0x218] sm:$0xff]
        %v547 = vld [vmem:[%s400 + $0x220] sm:$0xff]
        %v548 = vld [vmem:[%s400 + $0x228] sm:$0xff]
        %v549 = vpack.c.bf16 %v486, %v479
        %v550 = vpack.c.bf16 %v487, %v480
        %v551 = vpack.c.bf16 %v488, %v481
        %v552 = vpack.c.bf16 %v489, %v482
        %v553 = vpack.c.bf16 %v490, %v483
        %v554 = vpack.c.bf16 %v491, %v484
        %v555 = vpack.c.bf16 %v492, %v485
        %v556 = vpack.c.bf16 %v500, %v493
        %v557 = vpack.c.bf16 %v501, %v494
        %v558 = vpack.c.bf16 %v502, %v495
        %v559 = vpack.c.bf16 %v503, %v496
        %v560 = vpack.c.bf16 %v504, %v497
        %v561 = vpack.c.bf16 %v505, %v498
        %v562 = vpack.c.bf16 %v506, %v499
        %v563 = vpack.c.bf16 %v514, %v507
        %v564 = vpack.c.bf16 %v515, %v508
        %v565 = vpack.c.bf16 %v516, %v509
        %v566 = vpack.c.bf16 %v517, %v510
        %v567 = vpack.c.bf16 %v518, %v511
        %v568 = vpack.c.bf16 %v519, %v512
        %v569 = vpack.c.bf16 %v520, %v513
        %v570 = vpack.c.bf16 %v528, %v521
        %v571 = vpack.c.bf16 %v529, %v522
        %v572 = vpack.c.bf16 %v530, %v523
        %v573 = vpack.c.bf16 %v531, %v524
        %v574 = vpack.c.bf16 %v532, %v525
        %v575 = vpack.c.bf16 %v533, %v526
        %v576 = vpack.c.bf16 %v534, %v527
        %v577 = vpack.c.bf16 %v542, %v535
        %v578 = vpack.c.bf16 %v543, %v536
        %v579 = vpack.c.bf16 %v544, %v537
        %v580 = vpack.c.bf16 %v545, %v538
        %v581 = vpack.c.bf16 %v546, %v539
        %v582 = vpack.c.bf16 %v547, %v540
        %v583 = vpack.c.bf16 %v548, %v541
        %v584 = vld [vmem:[#allocation5] sm:$0xff]
        %v585 = vld [vmem:[#allocation5 + $0x8] sm:$0xff]
        %v586 = vld [vmem:[#allocation5 + $0x10] sm:$0xff]
        %v587 = vld [vmem:[#allocation5 + $0x18] sm:$0xff]
        %v588 = vld [vmem:[#allocation5 + $0x20] sm:$0xff]
        %v589 = vld [vmem:[#allocation5 + $0x28] sm:$0xff]
        %v590 = vld [vmem:[#allocation5 + $0x30] sm:$0xff]
        %v591 = vld [vmem:[#allocation5 + $0x38] sm:$0xff]
        %v592 = vld [vmem:[#allocation5 + $0x40] sm:$0xff]
        %v593 = vld [vmem:[#allocation5 + $0x48] sm:$0xff]
        %v594 = vld [vmem:[#allocation5 + $0x50] sm:$0xff]
        %v595 = vld [vmem:[#allocation5 + $0x58] sm:$0xff]
        %v596 = vld [vmem:[#allocation5 + $0x60] sm:$0xff]
        %v597 = vld [vmem:[#allocation5 + $0x68] sm:$0xff]
        %v598 = vld [vmem:[#allocation5 + $0x70] sm:$0xff]
        %v599 = vld [vmem:[#allocation5 + $0x78] sm:$0xff]
        %v600 = vld [vmem:[#allocation5 + $0x80] sm:$0xff]
        %v601 = vld [vmem:[#allocation5 + $0x88] sm:$0xff]
        %v602 = vld [vmem:[#allocation5 + $0x90] sm:$0xff]
        %v603 = vld [vmem:[#allocation5 + $0x98] sm:$0xff]
        %v604 = vld [vmem:[#allocation5 + $0xa0] sm:$0xff]
        %v605 = vld [vmem:[#allocation5 + $0xa8] sm:$0xff]
        %v606 = vld [vmem:[#allocation5 + $0xb0] sm:$0xff]
        %v607 = vld [vmem:[#allocation5 + $0xb8] sm:$0xff]
        %v608 = vld [vmem:[#allocation5 + $0xc0] sm:$0xff]
        %v609 = vld [vmem:[#allocation5 + $0xc8] sm:$0xff]
        %v610 = vld [vmem:[#allocation5 + $0xd0] sm:$0xff]
        %v611 = vld [vmem:[#allocation5 + $0xd8] sm:$0xff]
        %v612 = vld [vmem:[#allocation5 + $0xe0] sm:$0xff]
        %v613 = vld [vmem:[#allocation5 + $0xe8] sm:$0xff]
        %v614 = vld [vmem:[#allocation5 + $0xf0] sm:$0xff]
        %v615 = vld [vmem:[#allocation5 + $0xf8] sm:$0xff]
        %v616 = vld [vmem:[#allocation5 + $0x100] sm:$0xff]
        %v617 = vld [vmem:[#allocation5 + $0x108] sm:$0xff]
        %v618 = vld [vmem:[#allocation5 + $0x110] sm:$0xff]
        %v619 = vld [vmem:[#allocation5 + $0x118] sm:$0xff]
        %v620 = vld [vmem:[#allocation5 + $0x120] sm:$0xff]
        %v621 = vld [vmem:[#allocation5 + $0x128] sm:$0xff]
        %v622 = vld [vmem:[#allocation5 + $0x130] sm:$0xff]
        %v623 = vld [vmem:[#allocation5 + $0x138] sm:$0xff]
        %v624 = vld [vmem:[#allocation5 + $0x140] sm:$0xff]
        %v625 = vld [vmem:[#allocation5 + $0x148] sm:$0xff]
        %v626 = vld [vmem:[#allocation5 + $0x150] sm:$0xff]
        %v627 = vld [vmem:[#allocation5 + $0x158] sm:$0xff]
        %v628 = vld [vmem:[#allocation5 + $0x160] sm:$0xff]
        %v629 = vld [vmem:[#allocation5 + $0x168] sm:$0xff]
        %v630 = vld [vmem:[#allocation5 + $0x170] sm:$0xff]
        %v631 = vld [vmem:[#allocation5 + $0x178] sm:$0xff]
        %v632 = vld [vmem:[#allocation5 + $0x180] sm:$0xff]
        %v633 = vld [vmem:[#allocation5 + $0x188] sm:$0xff]
        %v634 = vld [vmem:[#allocation5 + $0x190] sm:$0xff]
        %v635 = vld [vmem:[#allocation5 + $0x198] sm:$0xff]
        %v636 = vld [vmem:[#allocation5 + $0x1a0] sm:$0xff]
        %v637 = vld [vmem:[#allocation5 + $0x1a8] sm:$0xff]
        %v638 = vld [vmem:[#allocation5 + $0x1b0] sm:$0xff]
        %v639 = vld [vmem:[#allocation5 + $0x1b8] sm:$0xff]
        %v640 = vld [vmem:[#allocation5 + $0x1c0] sm:$0xff]
        %v641 = vld [vmem:[#allocation5 + $0x1c8] sm:$0xff]
        %v642 = vld [vmem:[#allocation5 + $0x1d0] sm:$0xff]
        %v643 = vld [vmem:[#allocation5 + $0x1d8] sm:$0xff]
        %v644 = vld [vmem:[#allocation5 + $0x1e0] sm:$0xff]
        %v645 = vld [vmem:[#allocation5 + $0x1e8] sm:$0xff]
        %v646 = vld [vmem:[#allocation5 + $0x1f0] sm:$0xff]
        %v647 = vld [vmem:[#allocation5 + $0x1f8] sm:$0xff]
        %v648 = vld [vmem:[#allocation5 + $0x200] sm:$0xff]
        %v649 = vld [vmem:[#allocation5 + $0x208] sm:$0xff]
        %v650 = vld [vmem:[#allocation5 + $0x210] sm:$0xff]
        %v651 = vld [vmem:[#allocation5 + $0x218] sm:$0xff]
        %v652 = vld [vmem:[#allocation5 + $0x220] sm:$0xff]
        %v653 = vld [vmem:[#allocation5 + $0x228] sm:$0xff]
        %v654 = vld [vmem:[#allocation5 + $0x230] sm:$0xff]
        %v655 = vld [vmem:[#allocation5 + $0x238] sm:$0xff]
        %v656 = vld [vmem:[#allocation5 + $0x240] sm:$0xff]
        %v657 = vld [vmem:[#allocation5 + $0x248] sm:$0xff]
        %v658 = vld [vmem:[#allocation5 + $0x250] sm:$0xff]
        %v659 = vld [vmem:[#allocation5 + $0x258] sm:$0xff]
        %v660 = vld [vmem:[#allocation5 + $0x260] sm:$0xff]
        %v661 = vld [vmem:[#allocation5 + $0x268] sm:$0xff]
        %v662 = vld [vmem:[#allocation5 + $0x270] sm:$0xff]
        %v663 = vld [vmem:[#allocation5 + $0x278] sm:$0xff]
        %v664 = vld [vmem:[#allocation5 + $0x280] sm:$0xff]
        %v665 = vld [vmem:[#allocation5 + $0x288] sm:$0xff]
        %v666 = vld [vmem:[#allocation5 + $0x290] sm:$0xff]
        %v667 = vld [vmem:[#allocation5 + $0x298] sm:$0xff]
        %v668 = vld [vmem:[#allocation5 + $0x2a0] sm:$0xff]
        %v669 = vld [vmem:[#allocation5 + $0x2a8] sm:$0xff]
        %v670 = vld [vmem:[#allocation5 + $0x2b0] sm:$0xff]
        %v671 = vld [vmem:[#allocation5 + $0x2b8] sm:$0xff]
        %v672 = vld [vmem:[#allocation5 + $0x2c0] sm:$0xff]
        %v673 = vld [vmem:[#allocation5 + $0x2c8] sm:$0xff]
        %v674 = vld [vmem:[#allocation5 + $0x2d0] sm:$0xff]
        %v675 = vld [vmem:[#allocation5 + $0x2d8] sm:$0xff]
        %v676 = vld [vmem:[#allocation5 + $0x2e0] sm:$0xff]
        %v677 = vld [vmem:[#allocation5 + $0x2e8] sm:$0xff]
        %v678 = vld [vmem:[#allocation5 + $0x2f0] sm:$0xff]
        %v679 = vld [vmem:[#allocation5 + $0x2f8] sm:$0xff]
        %v680 = vld [vmem:[#allocation5 + $0x300] sm:$0xff]
        %v681 = vld [vmem:[#allocation5 + $0x308] sm:$0xff]
        %v682 = vld [vmem:[#allocation7] sm:$0x3]
        %v684 = vlaneseq
        %v685 = vshrl.u32 %v684, 7
        %v686 = vsub.s32 0, %v685
        %v687 = vrot.slane %v682, %v686
        %v688 = vlaneseq
        %v689 = vshrl.u32 %v688, 7
        %v690 = vsub.s32 1, %v689
        %v691 = vrot.slane %v682, %v690
        %v792 = vunpack.c.l.b16 %v584
        %v793 = vunpack.c.h.b16 %v584
        %v794 = vunpack.c.l.b16 %v585
        %v795 = vunpack.c.h.b16 %v585
        %v796 = vunpack.c.l.b16 %v586
        %v797 = vunpack.c.h.b16 %v586
        %v798 = vunpack.c.l.b16 %v587
        %v799 = vunpack.c.h.b16 %v587
        %v800 = vunpack.c.l.b16 %v588
        %v801 = vunpack.c.h.b16 %v588
        %v802 = vunpack.c.l.b16 %v589
        %v803 = vunpack.c.h.b16 %v589
        %v804 = vunpack.c.l.b16 %v590
        %v805 = vunpack.c.h.b16 %v590
        %v806 = vunpack.c.l.b16 %v591
        %v807 = vunpack.c.h.b16 %v591
        %v808 = vunpack.c.l.b16 %v592
        %v809 = vunpack.c.h.b16 %v592
        %v810 = vunpack.c.l.b16 %v593
        %v811 = vunpack.c.h.b16 %v593
        %v812 = vunpack.c.l.b16 %v594
        %v813 = vunpack.c.h.b16 %v594
        %v814 = vunpack.c.l.b16 %v595
        %v815 = vunpack.c.h.b16 %v595
        %v816 = vunpack.c.l.b16 %v596
        %v817 = vunpack.c.h.b16 %v596
        %v818 = vunpack.c.l.b16 %v597
        %v819 = vunpack.c.h.b16 %v597
        %v820 = vunpack.c.l.b16 %v598
        %v821 = vunpack.c.h.b16 %v598
        %v822 = vunpack.c.l.b16 %v599
        %v823 = vunpack.c.h.b16 %v599
        %v824 = vunpack.c.l.b16 %v600
        %v825 = vunpack.c.h.b16 %v600
        %v826 = vunpack.c.l.b16 %v601
        %v827 = vunpack.c.h.b16 %v601
        %v828 = vunpack.c.l.b16 %v602
        %v829 = vunpack.c.h.b16 %v602
        %v830 = vunpack.c.l.b16 %v603
        %v831 = vunpack.c.h.b16 %v603
        %v832 = vunpack.c.l.b16 %v604
        %v833 = vunpack.c.h.b16 %v604
        %v834 = vunpack.c.l.b16 %v605
        %v835 = vunpack.c.h.b16 %v605
        %v836 = vunpack.c.l.b16 %v606
        %v837 = vunpack.c.h.b16 %v606
        %v838 = vunpack.c.l.b16 %v607
        %v839 = vunpack.c.h.b16 %v607
        %v840 = vunpack.c.l.b16 %v608
        %v841 = vunpack.c.h.b16 %v608
        %v842 = vunpack.c.l.b16 %v609
        %v843 = vunpack.c.h.b16 %v609
        %v844 = vunpack.c.l.b16 %v610
        %v845 = vunpack.c.h.b16 %v610
        %v846 = vunpack.c.l.b16 %v611
        %v847 = vunpack.c.h.b16 %v611
        %v848 = vunpack.c.l.b16 %v612
        %v849 = vunpack.c.h.b16 %v612
        %v850 = vunpack.c.l.b16 %v613
        %v851 = vunpack.c.h.b16 %v613
        %v852 = vunpack.c.l.b16 %v614
        %v853 = vunpack.c.h.b16 %v614
        %v854 = vunpack.c.l.b16 %v615
        %v855 = vunpack.c.h.b16 %v615
        %v856 = vunpack.c.l.b16 %v616
        %v857 = vunpack.c.h.b16 %v616
        %v858 = vunpack.c.l.b16 %v617
        %v859 = vunpack.c.h.b16 %v617
        %v860 = vunpack.c.l.b16 %v618
        %v861 = vunpack.c.h.b16 %v618
        %v862 = vunpack.c.l.b16 %v619
        %v863 = vunpack.c.h.b16 %v619
        %v864 = vunpack.c.l.b16 %v620
        %v865 = vunpack.c.h.b16 %v620
        %v866 = vunpack.c.l.b16 %v621
        %v867 = vunpack.c.h.b16 %v621
        %v868 = vunpack.c.l.b16 %v622
        %v869 = vunpack.c.h.b16 %v622
        %v870 = vunpack.c.l.b16 %v623
        %v871 = vunpack.c.h.b16 %v623
        %v872 = vunpack.c.l.b16 %v624
        %v873 = vunpack.c.h.b16 %v624
        %v874 = vunpack.c.l.b16 %v625
        %v875 = vunpack.c.h.b16 %v625
        %v876 = vunpack.c.l.b16 %v626
        %v877 = vunpack.c.h.b16 %v626
        %v878 = vunpack.c.l.b16 %v627
        %v879 = vunpack.c.h.b16 %v627
        %v880 = vunpack.c.l.b16 %v628
        %v881 = vunpack.c.h.b16 %v628
        %v882 = vunpack.c.l.b16 %v629
        %v883 = vunpack.c.h.b16 %v629
        %v884 = vunpack.c.l.b16 %v630
        %v885 = vunpack.c.h.b16 %v630
        %v886 = vunpack.c.l.b16 %v631
        %v887 = vunpack.c.h.b16 %v631
        %v888 = vunpack.c.l.b16 %v632
        %v889 = vunpack.c.h.b16 %v632
        %v890 = vunpack.c.l.b16 %v633
        %v891 = vunpack.c.h.b16 %v633
        %v892 = vunpack.c.l.b16 %v634
        %v893 = vunpack.c.h.b16 %v634
        %v894 = vunpack.c.l.b16 %v635
        %v895 = vunpack.c.h.b16 %v635
        %v896 = vunpack.c.l.b16 %v636
        %v897 = vunpack.c.h.b16 %v636
        %v898 = vunpack.c.l.b16 %v637
        %v899 = vunpack.c.h.b16 %v637
        %v900 = vunpack.c.l.b16 %v638
        %v901 = vunpack.c.h.b16 %v638
        %v902 = vunpack.c.l.b16 %v639
        %v903 = vunpack.c.h.b16 %v639
        %v904 = vunpack.c.l.b16 %v640
        %v905 = vunpack.c.h.b16 %v640
        %v906 = vunpack.c.l.b16 %v641
        %v907 = vunpack.c.h.b16 %v641
        %v908 = vunpack.c.l.b16 %v642
        %v909 = vunpack.c.h.b16 %v642
        %v910 = vunpack.c.l.b16 %v643
        %v911 = vunpack.c.h.b16 %v643
        %v912 = vunpack.c.l.b16 %v644
        %v913 = vunpack.c.h.b16 %v644
        %v914 = vunpack.c.l.b16 %v645
        %v915 = vunpack.c.h.b16 %v645
        %v916 = vunpack.c.l.b16 %v646
        %v917 = vunpack.c.h.b16 %v646
        %v918 = vunpack.c.l.b16 %v647
        %v919 = vunpack.c.h.b16 %v647
        %v920 = vunpack.c.l.b16 %v648
        %v921 = vunpack.c.h.b16 %v648
        %v922 = vunpack.c.l.b16 %v649
        %v923 = vunpack.c.h.b16 %v649
        %v924 = vunpack.c.l.b16 %v650
        %v925 = vunpack.c.h.b16 %v650
        %v926 = vunpack.c.l.b16 %v651
        %v927 = vunpack.c.h.b16 %v651
        %v928 = vunpack.c.l.b16 %v652
        %v929 = vunpack.c.h.b16 %v652
        %v930 = vunpack.c.l.b16 %v653
        %v931 = vunpack.c.h.b16 %v653
        %v932 = vunpack.c.l.b16 %v654
        %v933 = vunpack.c.h.b16 %v654
        %v934 = vunpack.c.l.b16 %v655
        %v935 = vunpack.c.h.b16 %v655
        %v936 = vunpack.c.l.b16 %v656
        %v937 = vunpack.c.h.b16 %v656
        %v938 = vunpack.c.l.b16 %v657
        %v939 = vunpack.c.h.b16 %v657
        %v940 = vunpack.c.l.b16 %v658
        %v941 = vunpack.c.h.b16 %v658
        %v942 = vunpack.c.l.b16 %v659
        %v943 = vunpack.c.h.b16 %v659
        %v944 = vunpack.c.l.b16 %v660
        %v945 = vunpack.c.h.b16 %v660
        %v946 = vunpack.c.l.b16 %v661
        %v947 = vunpack.c.h.b16 %v661
        %v948 = vunpack.c.l.b16 %v662
        %v949 = vunpack.c.h.b16 %v662
        %v950 = vunpack.c.l.b16 %v663
        %v951 = vunpack.c.h.b16 %v663
        %v952 = vunpack.c.l.b16 %v664
        %v953 = vunpack.c.h.b16 %v664
        %v954 = vunpack.c.l.b16 %v665
        %v955 = vunpack.c.h.b16 %v665
        %v956 = vunpack.c.l.b16 %v666
        %v957 = vunpack.c.h.b16 %v666
        %v958 = vunpack.c.l.b16 %v667
        %v959 = vunpack.c.h.b16 %v667
        %v960 = vunpack.c.l.b16 %v668
        %v961 = vunpack.c.h.b16 %v668
        %v962 = vunpack.c.l.b16 %v669
        %v963 = vunpack.c.h.b16 %v669
        %v964 = vunpack.c.l.b16 %v670
        %v965 = vunpack.c.h.b16 %v670
        %v966 = vunpack.c.l.b16 %v671
        %v967 = vunpack.c.h.b16 %v671
        %v968 = vunpack.c.l.b16 %v672
        %v969 = vunpack.c.h.b16 %v672
        %v970 = vunpack.c.l.b16 %v673
        %v971 = vunpack.c.h.b16 %v673
        %v972 = vunpack.c.l.b16 %v674
        %v973 = vunpack.c.h.b16 %v674
        %v974 = vunpack.c.l.b16 %v675
        %v975 = vunpack.c.h.b16 %v675
        %v976 = vunpack.c.l.b16 %v676
        %v977 = vunpack.c.h.b16 %v676
        %v978 = vunpack.c.l.b16 %v677
        %v979 = vunpack.c.h.b16 %v677
        %v980 = vunpack.c.l.b16 %v678
        %v981 = vunpack.c.h.b16 %v678
        %v982 = vunpack.c.l.b16 %v679
        %v983 = vunpack.c.h.b16 %v679
        %v984 = vunpack.c.l.b16 %v680
        %v985 = vunpack.c.h.b16 %v680
        %v986 = vunpack.c.l.b16 %v681
        %v987 = vunpack.c.h.b16 %v681
        %v988 = vpack.c.b16 %v794, %v792
        %v989 = vpack.c.b16 %v795, %v793
        %v990 = vpack.c.b16 %v798, %v796
        %v991 = vpack.c.b16 %v799, %v797
        %v992 = vpack.c.b16 %v802, %v800
        %v993 = vpack.c.b16 %v803, %v801
        %v994 = vpack.c.b16 %v806, %v804
        %v995 = vpack.c.b16 %v807, %v805
        %v996 = vpack.c.b16 %v810, %v808
        %v997 = vpack.c.b16 %v811, %v809
        %v998 = vpack.c.b16 %v814, %v812
        %v999 = vpack.c.b16 %v815, %v813
        %v1000 = vpack.c.b16 %v818, %v816
        %v1001 = vpack.c.b16 %v819, %v817
        %v1002 = vpack.c.b16 %v822, %v820
        %v1003 = vpack.c.b16 %v823, %v821
        %v1004 = vpack.c.b16 %v826, %v824
        %v1005 = vpack.c.b16 %v827, %v825
        %v1006 = vpack.c.b16 %v830, %v828
        %v1007 = vpack.c.b16 %v831, %v829
        %v1008 = vpack.c.b16 %v834, %v832
        %v1009 = vpack.c.b16 %v835, %v833
        %v1010 = vpack.c.b16 %v838, %v836
        %v1011 = vpack.c.b16 %v839, %v837
        %v1012 = vpack.c.b16 %v842, %v840
        %v1013 = vpack.c.b16 %v843, %v841
        %v1014 = vpack.c.b16 %v846, %v844
        %v1015 = vpack.c.b16 %v847, %v845
        %v1016 = vpack.c.b16 %v850, %v848
        %v1017 = vpack.c.b16 %v851, %v849
        %v1018 = vpack.c.b16 %v854, %v852
        %v1019 = vpack.c.b16 %v855, %v853
        %v1020 = vpack.c.b16 %v858, %v856
        %v1021 = vpack.c.b16 %v859, %v857
        %v1022 = vpack.c.b16 %v862, %v860
        %v1023 = vpack.c.b16 %v863, %v861
        %v1024 = vpack.c.b16 %v866, %v864
        %v1025 = vpack.c.b16 %v867, %v865
        %v1026 = vpack.c.b16 %v870, %v868
        %v1027 = vpack.c.b16 %v871, %v869
        %v1028 = vpack.c.b16 %v874, %v872
        %v1029 = vpack.c.b16 %v875, %v873
        %v1030 = vpack.c.b16 %v878, %v876
        %v1031 = vpack.c.b16 %v879, %v877
        %v1032 = vpack.c.b16 %v882, %v880
        %v1033 = vpack.c.b16 %v883, %v881
        %v1034 = vpack.c.b16 %v886, %v884
        %v1035 = vpack.c.b16 %v887, %v885
        %v1036 = vpack.c.b16 %v890, %v888
        %v1037 = vpack.c.b16 %v891, %v889
        %v1038 = vpack.c.b16 %v894, %v892
        %v1039 = vpack.c.b16 %v895, %v893
        %v1040 = vpack.c.b16 %v898, %v896
        %v1041 = vpack.c.b16 %v899, %v897
        %v1042 = vpack.c.b16 %v902, %v900
        %v1043 = vpack.c.b16 %v903, %v901
        %v1044 = vpack.c.b16 %v906, %v904
        %v1045 = vpack.c.b16 %v907, %v905
        %v1046 = vpack.c.b16 %v910, %v908
        %v1047 = vpack.c.b16 %v911, %v909
        %v1048 = vpack.c.b16 %v914, %v912
        %v1049 = vpack.c.b16 %v915, %v913
        %v1050 = vpack.c.b16 %v918, %v916
        %v1051 = vpack.c.b16 %v919, %v917
        %v1052 = vpack.c.b16 %v922, %v920
        %v1053 = vpack.c.b16 %v923, %v921
        %v1054 = vpack.c.b16 %v926, %v924
        %v1055 = vpack.c.b16 %v927, %v925
        %v1056 = vpack.c.b16 %v930, %v928
        %v1057 = vpack.c.b16 %v931, %v929
        %v1058 = vpack.c.b16 %v934, %v932
        %v1059 = vpack.c.b16 %v935, %v933
        %v1060 = vpack.c.b16 %v938, %v936
        %v1061 = vpack.c.b16 %v939, %v937
        %v1062 = vpack.c.b16 %v942, %v940
        %v1063 = vpack.c.b16 %v943, %v941
        %v1064 = vpack.c.b16 %v946, %v944
        %v1065 = vpack.c.b16 %v947, %v945
        %v1066 = vpack.c.b16 %v950, %v948
        %v1067 = vpack.c.b16 %v951, %v949
        %v1068 = vpack.c.b16 %v954, %v952
        %v1069 = vpack.c.b16 %v955, %v953
        %v1070 = vpack.c.b16 %v958, %v956
        %v1071 = vpack.c.b16 %v959, %v957
        %v1072 = vpack.c.b16 %v962, %v960
        %v1073 = vpack.c.b16 %v963, %v961
        %v1074 = vpack.c.b16 %v966, %v964
        %v1075 = vpack.c.b16 %v967, %v965
        %v1076 = vpack.c.b16 %v970, %v968
        %v1077 = vpack.c.b16 %v971, %v969
        %v1078 = vpack.c.b16 %v974, %v972
        %v1079 = vpack.c.b16 %v975, %v973
        %v1080 = vpack.c.b16 %v978, %v976
        %v1081 = vpack.c.b16 %v979, %v977
        %v1082 = vpack.c.b16 %v982, %v980
        %v1083 = vpack.c.b16 %v983, %v981
        %v1084 = vpack.c.b16 %v986, %v984
        %v1085 = vpack.c.b16 %v987, %v985
        %vm1184 = vcmask 130048
        %v1186 = vsel %vm1184, %v555, 0
        %v1189 = vsel %vm1184, %v562, 0
        %v1192 = vsel %vm1184, %v569, 0
        %v1195 = vsel %vm1184, %v576, 0
        %v1198 = vsel %vm1184, %v583, 0
        %1200 = vmatprep.subr.bf16.mxu0 %v989
        %1201 = vmatpush1.bf16.msra.mxu0 %v988
        %1202 = vmatprep.subr.bf16.mxu0 %v991
        %1203 = vmatpush1.bf16.msra.mxu0 %v990
        %1204 = vmatprep.subr.bf16.mxu0 %v993
        %1205 = vmatpush1.bf16.msra.mxu0 %v992
        %1206 = vmatprep.subr.bf16.mxu0 %v995
        %1207 = vmatpush1.bf16.msra.mxu0 %v994
        %1208 = vmatprep.subr.bf16.mxu0 %v997
        %1209 = vmatpush1.bf16.msra.mxu0 %v996
        %1210 = vmatprep.subr.bf16.mxu0 %v999
        %1211 = vmatpush1.bf16.msra.mxu0 %v998
        %1212 = vmatprep.subr.bf16.mxu0 %v1001
        %1213 = vmatpush1.bf16.msra.mxu0 %v1000
        %1214 = vmatprep.subr.bf16.mxu0 %v1003
        %1215 = vmatpush1.bf16.msra.mxu0 %v1002
        %1216 = vmatprep.subr.bf16.mxu0 %v1005
        %1217 = vmatpush1.bf16.msra.mxu0 %v1004
        %1218 = vmatprep.subr.bf16.mxu0 %v1007
        %1219 = vmatpush1.bf16.msra.mxu0 %v1006
        %1220 = vmatprep.subr.bf16.mxu0 %v1009
        %1221 = vmatpush1.bf16.msra.mxu0 %v1008
        %1222 = vmatprep.subr.bf16.mxu0 %v1011
        %1223 = vmatpush1.bf16.msra.mxu0 %v1010
        %1224 = vmatprep.subr.bf16.mxu0 %v1013
        %1225 = vmatpush1.bf16.msra.mxu0 %v1012
        %1226 = vmatprep.subr.bf16.mxu0 %v1015
        %1227 = vmatpush1.bf16.msra.mxu0 %v1014
        %1228 = vmatprep.subr.bf16.mxu0 %v1017
        %1229 = vmatpush1.bf16.msra.mxu0 %v1016
        %1230 = vmatprep.subr.bf16.mxu0 %v1019
        %1231 = vmatpush1.bf16.msra.mxu0 %v1018
        %1232 = vmatprep.mubr.bf16.mxu0 %v550
        %1233 = vmatmul.mubr.bf16.gmra.mrb[0].mxu0 %v549
        %v1234 = vpop.f32.mrb[0].mxu0
        %v1235 = vadd.f32 %v687, %v1234
        %v1236 = vpop.f32.mrb[0].mxu0
        %v1237 = vadd.f32 %v691, %v1236
        %v1238 = vpop.f32.mrb[0].mxu0
        %v1239 = vadd.f32 %v687, %v1238
        %v1240 = vpop.f32.mrb[0].mxu0
        %v1241 = vadd.f32 %v691, %v1240
        %1242 = vmatprep.mubr.bf16.mxu0 %v557
        %1243 = vmatmul.mubr.bf16.gmra.mrb[0].mxu0 %v556
        %v1244 = vpop.f32.mrb[0].mxu0
        %v1245 = vadd.f32 %v687, %v1244
        %v1246 = vpop.f32.mrb[0].mxu0
        %v1247 = vadd.f32 %v691, %v1246
        %v1248 = vpop.f32.mrb[0].mxu0
        %v1249 = vadd.f32 %v687, %v1248
        %v1250 = vpop.f32.mrb[0].mxu0
        %v1251 = vadd.f32 %v691, %v1250
        %1252 = vmatprep.mubr.bf16.mxu0 %v564
        %1253 = vmatmul.mubr.bf16.gmra.mrb[0].mxu0 %v563
        %v1254 = vpop.f32.mrb[0].mxu0
        %v1255 = vadd.f32 %v687, %v1254
        %v1256 = vpop.f32.mrb[0].mxu0
        %v1257 = vadd.f32 %v691, %v1256
        %v1258 = vpop.f32.mrb[0].mxu0
        %v1259 = vadd.f32 %v687, %v1258
        %v1260 = vpop.f32.mrb[0].mxu0
        %v1261 = vadd.f32 %v691, %v1260
        %1262 = vmatprep.mubr.bf16.mxu0 %v571
        %1263 = vmatmul.mubr.bf16.gmra.mrb[0].mxu0 %v570
        %v1264 = vpop.f32.mrb[0].mxu0
        %v1265 = vadd.f32 %v687, %v1264
        %v1266 = vpop.f32.mrb[0].mxu0
        %v1267 = vadd.f32 %v691, %v1266
        %v1268 = vpop.f32.mrb[0].mxu0
        %v1269 = vadd.f32 %v687, %v1268
        %v1270 = vpop.f32.mrb[0].mxu0
        %v1271 = vadd.f32 %v691, %v1270
        %1272 = vmatprep.mubr.bf16.mxu0 %v578
        %1273 = vmatmul.mubr.bf16.gmra.mrb[0].mxu0 %v577
        %v1274 = vpop.f32.mrb[0].mxu0
        %v1275 = vadd.f32 %v687, %v1274
        %v1276 = vpop.f32.mrb[0].mxu0
        %v1277 = vadd.f32 %v691, %v1276
        %v1278 = vpop.f32.mrb[0].mxu0
        %v1279 = vadd.f32 %v687, %v1278
        %v1280 = vpop.f32.mrb[0].mxu0
        %v1281 = vadd.f32 %v691, %v1280
        %1282 = vdwg.mxu0
        %1283 = vmatprep.subr.bf16.mxu0 %v1021
        %1284 = vmatpush1.bf16.msra.mxu0 %v1020
        %1285 = vmatprep.subr.bf16.mxu0 %v1023
        %1286 = vmatpush1.bf16.msra.mxu0 %v1022
        %1287 = vmatprep.subr.bf16.mxu0 %v1025
        %1288 = vmatpush1.bf16.msra.mxu0 %v1024
        %1289 = vmatprep.subr.bf16.mxu0 %v1027
        %1290 = vmatpush1.bf16.msra.mxu0 %v1026
        %1291 = vmatprep.subr.bf16.mxu0 %v1029
        %1292 = vmatpush1.bf16.msra.mxu0 %v1028
        %1293 = vmatprep.subr.bf16.mxu0 %v1031
        %1294 = vmatpush1.bf16.msra.mxu0 %v1030
        %1295 = vmatprep.subr.bf16.mxu0 %v1033
        %1296 = vmatpush1.bf16.msra.mxu0 %v1032
        %1297 = vmatprep.subr.bf16.mxu0 %v1035
        %1298 = vmatpush1.bf16.msra.mxu0 %v1034
        %1299 = vmatprep.subr.bf16.mxu0 %v1037
        %1300 = vmatpush1.bf16.msra.mxu0 %v1036
        %1301 = vmatprep.subr.bf16.mxu0 %v1039
        %1302 = vmatpush1.bf16.msra.mxu0 %v1038
        %1303 = vmatprep.subr.bf16.mxu0 %v1041
        %1304 = vmatpush1.bf16.msra.mxu0 %v1040
        %1305 = vmatprep.subr.bf16.mxu0 %v1043
        %1306 = vmatpush1.bf16.msra.mxu0 %v1042
        %1307 = vmatprep.subr.bf16.mxu0 %v1045
        %1308 = vmatpush1.bf16.msra.mxu0 %v1044
        %1309 = vmatprep.subr.bf16.mxu0 %v1047
        %1310 = vmatpush1.bf16.msra.mxu0 %v1046
        %1311 = vmatprep.subr.bf16.mxu0 %v1049
        %1312 = vmatpush1.bf16.msra.mxu0 %v1048
        %1313 = vmatprep.subr.bf16.mxu0 %v1051
        %1314 = vmatpush1.bf16.msra.mxu0 %v1050
        %1315 = vmatprep.mubr.bf16.mxu0 %v552
        %1316 = vmatmul.mubr.bf16.gmra.mrb[0].mxu0 %v551
        %v1317 = vpop.f32.mrb[0].mxu0
        %v1318 = vadd.f32 %v1235, %v1317
        %v1319 = vpop.f32.mrb[0].mxu0
        %v1320 = vadd.f32 %v1237, %v1319
        %v1321 = vpop.f32.mrb[0].mxu0
        %v1322 = vadd.f32 %v1239, %v1321
        %v1323 = vpop.f32.mrb[0].mxu0
        %v1324 = vadd.f32 %v1241, %v1323
        %1325 = vmatprep.mubr.bf16.mxu0 %v559
        %1326 = vmatmul.mubr.bf16.gmra.mrb[0].mxu0 %v558
        %v1327 = vpop.f32.mrb[0].mxu0
        %v1328 = vadd.f32 %v1245, %v1327
        %v1329 = vpop.f32.mrb[0].mxu0
        %v1330 = vadd.f32 %v1247, %v1329
        %v1331 = vpop.f32.mrb[0].mxu0
        %v1332 = vadd.f32 %v1249, %v1331
        %v1333 = vpop.f32.mrb[0].mxu0
        %v1334 = vadd.f32 %v1251, %v1333
        %1335 = vmatprep.mubr.bf16.mxu0 %v566
        %1336 = vmatmul.mubr.bf16.gmra.mrb[0].mxu0 %v565
        %v1337 = vpop.f32.mrb[0].mxu0
        %v1338 = vadd.f32 %v1255, %v1337
        %v1339 = vpop.f32.mrb[0].mxu0
        %v1340 = vadd.f32 %v1257, %v1339
        %v1341 = vpop.f32.mrb[0].mxu0
        %v1342 = vadd.f32 %v1259, %v1341
        %v1343 = vpop.f32.mrb[0].mxu0
        %v1344 = vadd.f32 %v1261, %v1343
        %1345 = vmatprep.mubr.bf16.mxu0 %v573
        %1346 = vmatmul.mubr.bf16.gmra.mrb[0].mxu0 %v572
        %v1347 = vpop.f32.mrb[0].mxu0
        %v1348 = vadd.f32 %v1265, %v1347
        %v1349 = vpop.f32.mrb[0].mxu0
        %v1350 = vadd.f32 %v1267, %v1349
        %v1351 = vpop.f32.mrb[0].mxu0
        %v1352 = vadd.f32 %v1269, %v1351
        %v1353 = vpop.f32.mrb[0].mxu0
        %v1354 = vadd.f32 %v1271, %v1353
        %1355 = vmatprep.mubr.bf16.mxu0 %v580
        %1356 = vmatmul.mubr.bf16.gmra.mrb[0].mxu0 %v579
        %v1357 = vpop.f32.mrb[0].mxu0
        %v1358 = vadd.f32 %v1275, %v1357
        %v1359 = vpop.f32.mrb[0].mxu0
        %v1360 = vadd.f32 %v1277, %v1359
        %v1361 = vpop.f32.mrb[0].mxu0
        %v1362 = vadd.f32 %v1279, %v1361
        %v1363 = vpop.f32.mrb[0].mxu0
        %v1364 = vadd.f32 %v1281, %v1363
        %1365 = vdwg.mxu0
        %1366 = vmatprep.subr.bf16.mxu0 %v1053
        %1367 = vmatpush1.bf16.msra.mxu0 %v1052
        %1368 = vmatprep.subr.bf16.mxu0 %v1055
        %1369 = vmatpush1.bf16.msra.mxu0 %v1054
        %1370 = vmatprep.subr.bf16.mxu0 %v1057
        %1371 = vmatpush1.bf16.msra.mxu0 %v1056
        %1372 = vmatprep.subr.bf16.mxu0 %v1059
        %1373 = vmatpush1.bf16.msra.mxu0 %v1058
        %1374 = vmatprep.subr.bf16.mxu0 %v1061
        %1375 = vmatpush1.bf16.msra.mxu0 %v1060
        %1376 = vmatprep.subr.bf16.mxu0 %v1063
        %1377 = vmatpush1.bf16.msra.mxu0 %v1062
        %1378 = vmatprep.subr.bf16.mxu0 %v1065
        %1379 = vmatpush1.bf16.msra.mxu0 %v1064
        %1380 = vmatprep.subr.bf16.mxu0 %v1067
        %1381 = vmatpush1.bf16.msra.mxu0 %v1066
        %1382 = vmatprep.subr.bf16.mxu0 %v1069
        %1383 = vmatpush1.bf16.msra.mxu0 %v1068
        %1384 = vmatprep.subr.bf16.mxu0 %v1071
        %1385 = vmatpush1.bf16.msra.mxu0 %v1070
        %1386 = vmatprep.subr.bf16.mxu0 %v1073
        %1387 = vmatpush1.bf16.msra.mxu0 %v1072
        %1388 = vmatprep.subr.bf16.mxu0 %v1075
        %1389 = vmatpush1.bf16.msra.mxu0 %v1074
        %1390 = vmatprep.subr.bf16.mxu0 %v1077
        %1391 = vmatpush1.bf16.msra.mxu0 %v1076
        %1392 = vmatprep.subr.bf16.mxu0 %v1079
        %1393 = vmatpush1.bf16.msra.mxu0 %v1078
        %1394 = vmatprep.subr.bf16.mxu0 %v1081
        %1395 = vmatpush1.bf16.msra.mxu0 %v1080
        %1396 = vmatprep.subr.bf16.mxu0 %v1083
        %1397 = vmatpush1.bf16.msra.mxu0 %v1082
        %1398 = vmatprep.mubr.bf16.mxu0 %v554
        %1399 = vmatmul.mubr.bf16.gmra.mrb[0].mxu0 %v553
        %v1400 = vpop.f32.mrb[0].mxu0
        %v1401 = vadd.f32 %v1318, %v1400
        %v1402 = vpop.f32.mrb[0].mxu0
        %v1403 = vadd.f32 %v1320, %v1402
        %v1404 = vpop.f32.mrb[0].mxu0
        %v1405 = vadd.f32 %v1322, %v1404
        %v1406 = vpop.f32.mrb[0].mxu0
        %v1407 = vadd.f32 %v1324, %v1406
        %1408 = vmatprep.mubr.bf16.mxu0 %v561
        %1409 = vmatmul.mubr.bf16.gmra.mrb[0].mxu0 %v560
        %v1410 = vpop.f32.mrb[0].mxu0
        %v1411 = vadd.f32 %v1328, %v1410
        %v1412 = vpop.f32.mrb[0].mxu0
        %v1413 = vadd.f32 %v1330, %v1412
        %v1414 = vpop.f32.mrb[0].mxu0
        %v1415 = vadd.f32 %v1332, %v1414
        %v1416 = vpop.f32.mrb[0].mxu0
        %v1417 = vadd.f32 %v1334, %v1416
        %1418 = vmatprep.mubr.bf16.mxu0 %v568
        %1419 = vmatmul.mubr.bf16.gmra.mrb[0].mxu0 %v567
        %v1420 = vpop.f32.mrb[0].mxu0
        %v1421 = vadd.f32 %v1338, %v1420
        %v1422 = vpop.f32.mrb[0].mxu0
        %v1423 = vadd.f32 %v1340, %v1422
        %v1424 = vpop.f32.mrb[0].mxu0
        %v1425 = vadd.f32 %v1342, %v1424
        %v1426 = vpop.f32.mrb[0].mxu0
        %v1427 = vadd.f32 %v1344, %v1426
        %1428 = vmatprep.mubr.bf16.mxu0 %v575
        %1429 = vmatmul.mubr.bf16.gmra.mrb[0].mxu0 %v574
        %v1430 = vpop.f32.mrb[0].mxu0
        %v1431 = vadd.f32 %v1348, %v1430
        %v1432 = vpop.f32.mrb[0].mxu0
        %v1433 = vadd.f32 %v1350, %v1432
        %v1434 = vpop.f32.mrb[0].mxu0
        %v1435 = vadd.f32 %v1352, %v1434
        %v1436 = vpop.f32.mrb[0].mxu0
        %v1437 = vadd.f32 %v1354, %v1436
        %1438 = vmatprep.mubr.bf16.mxu0 %v582
        %1439 = vmatmul.mubr.bf16.gmra.mrb[0].mxu0 %v581
        %v1440 = vpop.f32.mrb[0].mxu0
        %v1441 = vadd.f32 %v1358, %v1440
        %v1442 = vpop.f32.mrb[0].mxu0
        %v1443 = vadd.f32 %v1360, %v1442
        %v1444 = vpop.f32.mrb[0].mxu0
        %v1445 = vadd.f32 %v1362, %v1444
        %v1446 = vpop.f32.mrb[0].mxu0
        %v1447 = vadd.f32 %v1364, %v1446
        %1448 = vdwg.mxu0
        %1449 = vmatprep.subr.bf16.mxu0 %v1085
        %1450 = vmatpush1.bf16.msra.mxu0 %v1084
        %1451 = vmatprep.subr.bf16.mxu0 0
        %1452 = vmatpush1.bf16.msra.mxu0 0
        %1453 = vmatprep.subr.bf16.mxu0 0
        %1454 = vmatpush1.bf16.msra.mxu0 0
        %1455 = vmatprep.subr.bf16.mxu0 0
        %1456 = vmatpush1.bf16.msra.mxu0 0
        %1457 = vmatprep.subr.bf16.mxu0 0
        %1458 = vmatpush1.bf16.msra.mxu0 0
        %1459 = vmatprep.subr.bf16.mxu0 0
        %1460 = vmatpush1.bf16.msra.mxu0 0
        %1461 = vmatprep.subr.bf16.mxu0 0
        %1462 = vmatpush1.bf16.msra.mxu0 0
        %1463 = vmatprep.subr.bf16.mxu0 0
        %1464 = vmatpush1.bf16.msra.mxu0 0
        %1465 = vmatprep.subr.bf16.mxu0 0
        %1466 = vmatpush1.bf16.msra.mxu0 0
        %1467 = vmatprep.subr.bf16.mxu0 0
        %1468 = vmatpush1.bf16.msra.mxu0 0
        %1469 = vmatprep.subr.bf16.mxu0 0
        %1470 = vmatpush1.bf16.msra.mxu0 0
        %1471 = vmatprep.subr.bf16.mxu0 0
        %1472 = vmatpush1.bf16.msra.mxu0 0
        %1473 = vmatprep.subr.bf16.mxu0 0
        %1474 = vmatpush1.bf16.msra.mxu0 0
        %1475 = vmatprep.subr.bf16.mxu0 0
        %1476 = vmatpush1.bf16.msra.mxu0 0
        %1477 = vmatprep.subr.bf16.mxu0 0
        %1478 = vmatpush1.bf16.msra.mxu0 0
        %1479 = vmatprep.subr.bf16.mxu0 0
        %1480 = vmatpush1.bf16.msra.mxu0 0
        %1481 = vmatprep.mubr.bf16.mxu0 0
        %1482 = vmatmul.mubr.bf16.gmra.mrb[0].mxu0 %v1186
        %v1483 = vpop.f32.mrb[0].mxu0
        %v1484 = vadd.f32 %v1401, %v1483
        %v1485 = vpop.f32.mrb[0].mxu0
        %v1486 = vadd.f32 %v1403, %v1485
        %v1487 = vpop.f32.mrb[0].mxu0
        %v1488 = vadd.f32 %v1405, %v1487
        %v1489 = vpop.f32.mrb[0].mxu0
        %v1490 = vadd.f32 %v1407, %v1489
        %1491 = vmatprep.mubr.bf16.mxu0 0
        %1492 = vmatmul.mubr.bf16.gmra.mrb[0].mxu0 %v1189
        %v1493 = vpop.f32.mrb[0].mxu0
        %v1494 = vadd.f32 %v1411, %v1493
        %v1495 = vpop.f32.mrb[0].mxu0
        %v1496 = vadd.f32 %v1413, %v1495
        %v1497 = vpop.f32.mrb[0].mxu0
        %v1498 = vadd.f32 %v1415, %v1497
        %v1499 = vpop.f32.mrb[0].mxu0
        %v1500 = vadd.f32 %v1417, %v1499
        %1501 = vmatprep.mubr.bf16.mxu0 0
        %1502 = vmatmul.mubr.bf16.gmra.mrb[0].mxu0 %v1192
        %v1503 = vpop.f32.mrb[0].mxu0
        %v1504 = vadd.f32 %v1421, %v1503
        %v1505 = vpop.f32.mrb[0].mxu0
        %v1506 = vadd.f32 %v1423, %v1505
        %v1507 = vpop.f32.mrb[0].mxu0
        %v1508 = vadd.f32 %v1425, %v1507
        %v1509 = vpop.f32.mrb[0].mxu0
        %v1510 = vadd.f32 %v1427, %v1509
        %1511 = vmatprep.mubr.bf16.mxu0 0
        %1512 = vmatmul.mubr.bf16.gmra.mrb[0].mxu0 %v1195
        %v1513 = vpop.f32.mrb[0].mxu0
        %v1514 = vadd.f32 %v1431, %v1513
        %v1515 = vpop.f32.mrb[0].mxu0
        %v1516 = vadd.f32 %v1433, %v1515
        %v1517 = vpop.f32.mrb[0].mxu0
        %v1518 = vadd.f32 %v1435, %v1517
        %v1519 = vpop.f32.mrb[0].mxu0
        %v1520 = vadd.f32 %v1437, %v1519
        %1521 = vmatprep.mubr.bf16.mxu0 0
        %1522 = vmatmul.mubr.bf16.gmra.mrb[0].mxu0 %v1198
        %v1523 = vpop.f32.mrb[0].mxu0
        %v1524 = vadd.f32 %v1441, %v1523
        %v1525 = vpop.f32.mrb[0].mxu0
        %v1526 = vadd.f32 %v1443, %v1525
        %v1527 = vpop.f32.mrb[0].mxu0
        %v1528 = vadd.f32 %v1445, %v1527
        %v1529 = vpop.f32.mrb[0].mxu0
        %v1530 = vadd.f32 %v1447, %v1529
        %1531 = vdwg.mxu0
        %v1532 = vtanh.pop %v1484
        %v1533 = vtanh.pop %v1486
        %v1534 = vtanh.pop %v1488
        %v1535 = vtanh.pop %v1490
        %v1536 = vtanh.pop %v1494
        %v1537 = vtanh.pop %v1496
        %v1538 = vtanh.pop %v1498
        %v1539 = vtanh.pop %v1500
        %v1540 = vtanh.pop %v1504
        %v1541 = vtanh.pop %v1506
        %v1542 = vtanh.pop %v1508
        %v1543 = vtanh.pop %v1510
        %v1544 = vtanh.pop %v1514
        %v1545 = vtanh.pop %v1516
        %v1546 = vtanh.pop %v1518
        %v1547 = vtanh.pop %v1520
        %v1548 = vtanh.pop %v1524
        %v1549 = vtanh.pop %v1526
        %v1550 = vtanh.pop %v1528
        %v1551 = vtanh.pop %v1530
        %v1552 = vpack.c.bf16 %v1534, %v1532
        %v1553 = vpack.c.bf16 %v1535, %v1533
        %v1554 = vpack.c.bf16 %v1538, %v1536
        %v1555 = vpack.c.bf16 %v1539, %v1537
        %v1556 = vpack.c.bf16 %v1542, %v1540
        %v1557 = vpack.c.bf16 %v1543, %v1541
        %v1558 = vpack.c.bf16 %v1546, %v1544
        %v1559 = vpack.c.bf16 %v1547, %v1545
        %v1560 = vpack.c.bf16 %v1550, %v1548
        %v1561 = vpack.c.bf16 %v1551, %v1549
        %v1562 = vld [vmem:[#allocation8] sm:$0xf]
        %v1563 = vld [vmem:[#allocation8 + $0x4] sm:$0xf]
        %v1564 = vld [vmem:[#allocation8 + $0x8] sm:$0xf]
        %v1565 = vld [vmem:[#allocation8 + $0xc] sm:$0xf]
        %v1566 = vld [vmem:[#allocation8 + $0x10] sm:$0xf]
        %v1567 = vld [vmem:[#allocation8 + $0x14] sm:$0xf]
        %v1568 = vld [vmem:[#allocation8 + $0x18] sm:$0xf]
        %v1569 = vld [vmem:[#allocation8 + $0x1c] sm:$0xf]
        %v1570 = vld [vmem:[#allocation8 + $0x20] sm:$0xf]
        %v1571 = vld [vmem:[#allocation8 + $0x24] sm:$0xf]
        %v1572 = vld [vmem:[#allocation8 + $0x28] sm:$0xf]
        %v1573 = vld [vmem:[#allocation8 + $0x2c] sm:$0xf]
        %v1574 = vld [vmem:[#allocation8 + $0x30] sm:$0xf]
        %v1575 = vld [vmem:[#allocation8 + $0x34] sm:$0xf]
        %v1576 = vld [vmem:[#allocation8 + $0x38] sm:$0xf]
        %v1577 = vld [vmem:[#allocation8 + $0x3c] sm:$0xf]
        %v1578 = vld [vmem:[#allocation8 + $0x40] sm:$0xf]
        %v1579 = vld [vmem:[#allocation8 + $0x44] sm:$0xf]
        %v1580 = vld [vmem:[#allocation8 + $0x48] sm:$0xf]
        %v1581 = vld [vmem:[#allocation8 + $0x4c] sm:$0xf]
        %v1582 = vld [vmem:[#allocation8 + $0x50] sm:$0xf]
        %v1583 = vld [vmem:[#allocation8 + $0x54] sm:$0xf]
        %v1584 = vld [vmem:[#allocation8 + $0x58] sm:$0xf]
        %v1585 = vld [vmem:[#allocation8 + $0x5c] sm:$0xf]
        %v1586 = vld [vmem:[#allocation8 + $0x60] sm:$0xf]
        %v1587 = vld [vmem:[#allocation8 + $0x64] sm:$0xf]
        %v1588 = vld [vmem:[#allocation8 + $0x68] sm:$0xf]
        %v1589 = vld [vmem:[#allocation8 + $0x6c] sm:$0xf]
        %v1590 = vld [vmem:[#allocation8 + $0x70] sm:$0xf]
        %v1591 = vld [vmem:[#allocation8 + $0x74] sm:$0xf]
        %v1592 = vld [vmem:[#allocation8 + $0x78] sm:$0xf]
        %v1593 = vld [vmem:[#allocation8 + $0x7c] sm:$0xf]
        %v1594 = vld [vmem:[#allocation10] sm:$0x1]
        %v1596 = vlaneseq
        %v1597 = vshrl.u32 %v1596, 7
        %v1598 = vsub.s32 0, %v1597
        %v1599 = vrot.slane %v1594, %v1598
        %v1633 = vunpack.c.l.b16 %v1562
        %v1634 = vunpack.c.l.b16 %v1563
        %v1635 = vunpack.c.l.b16 %v1564
        %v1636 = vunpack.c.l.b16 %v1565
        %v1637 = vunpack.c.l.b16 %v1566
        %v1638 = vunpack.c.l.b16 %v1567
        %v1639 = vunpack.c.l.b16 %v1568
        %v1640 = vunpack.c.l.b16 %v1569
        %v1641 = vunpack.c.l.b16 %v1570
        %v1642 = vunpack.c.l.b16 %v1571
        %v1643 = vunpack.c.l.b16 %v1572
        %v1644 = vunpack.c.l.b16 %v1573
        %v1645 = vunpack.c.l.b16 %v1574
        %v1646 = vunpack.c.l.b16 %v1575
        %v1647 = vunpack.c.l.b16 %v1576
        %v1648 = vunpack.c.l.b16 %v1577
        %v1649 = vunpack.c.l.b16 %v1578
        %v1650 = vunpack.c.l.b16 %v1579
        %v1651 = vunpack.c.l.b16 %v1580
        %v1652 = vunpack.c.l.b16 %v1581
        %v1653 = vunpack.c.l.b16 %v1582
        %v1654 = vunpack.c.l.b16 %v1583
        %v1655 = vunpack.c.l.b16 %v1584
        %v1656 = vunpack.c.l.b16 %v1585
        %v1657 = vunpack.c.l.b16 %v1586
        %v1658 = vunpack.c.l.b16 %v1587
        %v1659 = vunpack.c.l.b16 %v1588
        %v1660 = vunpack.c.l.b16 %v1589
        %v1661 = vunpack.c.l.b16 %v1590
        %v1662 = vunpack.c.l.b16 %v1591
        %v1663 = vunpack.c.l.b16 %v1592
        %v1664 = vunpack.c.l.b16 %v1593
        %v1665 = vpack.c.b16 %v1634, %v1633
        %v1666 = vpack.c.b16 %v1636, %v1635
        %v1667 = vpack.c.b16 %v1638, %v1637
        %v1668 = vpack.c.b16 %v1640, %v1639
        %v1669 = vpack.c.b16 %v1642, %v1641
        %v1670 = vpack.c.b16 %v1644, %v1643
        %v1671 = vpack.c.b16 %v1646, %v1645
        %v1672 = vpack.c.b16 %v1648, %v1647
        %v1673 = vpack.c.b16 %v1650, %v1649
        %v1674 = vpack.c.b16 %v1652, %v1651
        %v1675 = vpack.c.b16 %v1654, %v1653
        %v1676 = vpack.c.b16 %v1656, %v1655
        %v1677 = vpack.c.b16 %v1658, %v1657
        %v1678 = vpack.c.b16 %v1660, %v1659
        %v1679 = vpack.c.b16 %v1662, %v1661
        %v1680 = vpack.c.b16 %v1664, %v1663
        %1697 = vmatprep.subr.bf16.mxu0 0
        %1698 = vmatpush1.bf16.msra.mxu0 %v1665
        %1699 = vmatprep.subr.bf16.mxu0 0
        %1700 = vmatpush1.bf16.msra.mxu0 %v1666
        %1701 = vmatprep.subr.bf16.mxu0 0
        %1702 = vmatpush1.bf16.msra.mxu0 %v1667
        %1703 = vmatprep.subr.bf16.mxu0 0
        %1704 = vmatpush1.bf16.msra.mxu0 %v1668
        %1705 = vmatprep.subr.bf16.mxu0 0
        %1706 = vmatpush1.bf16.msra.mxu0 %v1669
        %1707 = vmatprep.subr.bf16.mxu0 0
        %1708 = vmatpush1.bf16.msra.mxu0 %v1670
        %1709 = vmatprep.subr.bf16.mxu0 0
        %1710 = vmatpush1.bf16.msra.mxu0 %v1671
        %1711 = vmatprep.subr.bf16.mxu0 0
        %1712 = vmatpush1.bf16.msra.mxu0 %v1672
        %1713 = vmatprep.subr.bf16.mxu0 0
        %1714 = vmatpush1.bf16.msra.mxu0 %v1673
        %1715 = vmatprep.subr.bf16.mxu0 0
        %1716 = vmatpush1.bf16.msra.mxu0 %v1674
        %1717 = vmatprep.subr.bf16.mxu0 0
        %1718 = vmatpush1.bf16.msra.mxu0 %v1675
        %1719 = vmatprep.subr.bf16.mxu0 0
        %1720 = vmatpush1.bf16.msra.mxu0 %v1676
        %1721 = vmatprep.subr.bf16.mxu0 0
        %1722 = vmatpush1.bf16.msra.mxu0 %v1677
        %1723 = vmatprep.subr.bf16.mxu0 0
        %1724 = vmatpush1.bf16.msra.mxu0 %v1678
        %1725 = vmatprep.subr.bf16.mxu0 0
        %1726 = vmatpush1.bf16.msra.mxu0 %v1679
        %1727 = vmatprep.subr.bf16.mxu0 0
        %1728 = vmatpush1.bf16.msra.mxu0 %v1680
        %1729 = vmatprep.mubr.bf16.mxu0 %v1553
        %1730 = vmatmul.mubr.bf16.gmra.mrb[0].mxu0 %v1552
        %v1731 = vpop.f32.mrb[0].mxu0
        %v1732 = vadd.f32 %v1599, %v1731
        %v1733 = vpop.f32.mrb[0].mxu0
        %v1734 = vpop.f32.mrb[0].mxu0
        %v1735 = vadd.f32 %v1599, %v1734
        %v1736 = vpop.f32.mrb[0].mxu0
        %1737 = vmatprep.mubr.bf16.mxu0 %v1555
        %1738 = vmatmul.mubr.bf16.gmra.mrb[0].mxu0 %v1554
        %v1739 = vpop.f32.mrb[0].mxu0
        %v1740 = vadd.f32 %v1599, %v1739
        %v1741 = vpop.f32.mrb[0].mxu0
        %v1742 = vpop.f32.mrb[0].mxu0
        %v1743 = vadd.f32 %v1599, %v1742
        %v1744 = vpop.f32.mrb[0].mxu0
        %1745 = vmatprep.mubr.bf16.mxu0 %v1557
        %1746 = vmatmul.mubr.bf16.gmra.mrb[0].mxu0 %v1556
        %v1747 = vpop.f32.mrb[0].mxu0
        %v1748 = vadd.f32 %v1599, %v1747
        %v1749 = vpop.f32.mrb[0].mxu0
        %v1750 = vpop.f32.mrb[0].mxu0
        %v1751 = vadd.f32 %v1599, %v1750
        %v1752 = vpop.f32.mrb[0].mxu0
        %1753 = vmatprep.mubr.bf16.mxu0 %v1559
        %1754 = vmatmul.mubr.bf16.gmra.mrb[0].mxu0 %v1558
        %v1755 = vpop.f32.mrb[0].mxu0
        %v1756 = vadd.f32 %v1599, %v1755
        %v1757 = vpop.f32.mrb[0].mxu0
        %v1758 = vpop.f32.mrb[0].mxu0
        %v1759 = vadd.f32 %v1599, %v1758
        %v1760 = vpop.f32.mrb[0].mxu0
        %1761 = vmatprep.mubr.bf16.mxu0 %v1561
        %1762 = vmatmul.mubr.bf16.gmra.mrb[0].mxu0 %v1560
        %v1763 = vpop.f32.mrb[0].mxu0
        %v1764 = vadd.f32 %v1599, %v1763
        %v1765 = vpop.f32.mrb[0].mxu0
        %v1766 = vpop.f32.mrb[0].mxu0
        %v1767 = vadd.f32 %v1599, %v1766
        %v1768 = vpop.f32.mrb[0].mxu0
        %1769 = vdwg.mxu0
        %v1770 = vtanh.pop %v1732
        %v1771 = vtanh.pop %v1735
        %v1772 = vtanh.pop %v1740
        %v1773 = vtanh.pop %v1743
        %v1774 = vtanh.pop %v1748
        %v1775 = vtanh.pop %v1751
        %v1776 = vtanh.pop %v1756
        %v1777 = vtanh.pop %v1759
        %v1778 = vtanh.pop %v1764
        %v1779 = vtanh.pop %v1767
        %v1780 = vpack.c.bf16 %v1771, %v1770
        %v1781 = vpack.c.bf16 %v1773, %v1772
        %v1782 = vpack.c.bf16 %v1775, %v1774
        %v1783 = vpack.c.bf16 %v1777, %v1776
        %v1784 = vpack.c.bf16 %v1779, %v1778
        %v1785 = vld [vmem:[#allocation11] sm:$0xf]
        %v1786 = vld [vmem:[#allocation11 + $0x4] sm:$0xf]
        %v1787 = vld [vmem:[#allocation11 + $0x8] sm:$0xf]
        %v1788 = vld [vmem:[#allocation11 + $0xc] sm:$0xf]
        %v1789 = vld [vmem:[#allocation11 + $0x10] sm:$0xf]
        %v1790 = vld [vmem:[#allocation11 + $0x14] sm:$0xf]
        %v1791 = vld [vmem:[#allocation11 + $0x18] sm:$0xf]
        %v1792 = vld [vmem:[#allocation11 + $0x1c] sm:$0xf]
        %v1793 = vld [vmem:[#allocation11 + $0x20] sm:$0xf]
        %v1794 = vld [vmem:[#allocation11 + $0x24] sm:$0xf]
        %v1795 = vld [vmem:[#allocation11 + $0x28] sm:$0xf]
        %v1796 = vld [vmem:[#allocation11 + $0x2c] sm:$0xf]
        %v1797 = vld [vmem:[#allocation11 + $0x30] sm:$0xf]
        %v1798 = vld [vmem:[#allocation11 + $0x34] sm:$0xf]
        %v1799 = vld [vmem:[#allocation11 + $0x38] sm:$0xf]
        %v1800 = vld [vmem:[#allocation11 + $0x3c] sm:$0xf]
        %v1801 = vld [vmem:[#allocation13] sm:$0x1]
        %v1803 = vlaneseq
        %v1804 = vshrl.u32 %v1803, 7
        %v1805 = vsub.s32 0, %v1804
        %v1806 = vrot.slane %v1801, %v1805
        %v1824 = vunpack.c.l.b16 %v1785
        %v1825 = vunpack.c.l.b16 %v1786
        %v1826 = vunpack.c.l.b16 %v1787
        %v1827 = vunpack.c.l.b16 %v1788
        %v1828 = vunpack.c.l.b16 %v1789
        %v1829 = vunpack.c.l.b16 %v1790
        %v1830 = vunpack.c.l.b16 %v1791
        %v1831 = vunpack.c.l.b16 %v1792
        %v1832 = vunpack.c.l.b16 %v1793
        %v1833 = vunpack.c.l.b16 %v1794
        %v1834 = vunpack.c.l.b16 %v1795
        %v1835 = vunpack.c.l.b16 %v1796
        %v1836 = vunpack.c.l.b16 %v1797
        %v1837 = vunpack.c.l.b16 %v1798
        %v1838 = vunpack.c.l.b16 %v1799
        %v1839 = vunpack.c.l.b16 %v1800
        %v1840 = vpack.c.b16 %v1825, %v1824
        %v1841 = vpack.c.b16 %v1827, %v1826
        %v1842 = vpack.c.b16 %v1829, %v1828
        %v1843 = vpack.c.b16 %v1831, %v1830
        %v1844 = vpack.c.b16 %v1833, %v1832
        %v1845 = vpack.c.b16 %v1835, %v1834
        %v1846 = vpack.c.b16 %v1837, %v1836
        %v1847 = vpack.c.b16 %v1839, %v1838
        %1856 = vmatprep.subr.bf16.mxu0 0
        %1857 = vmatpush1.bf16.msra.mxu0 %v1840
        %1858 = vmatprep.subr.bf16.mxu0 0
        %1859 = vmatpush1.bf16.msra.mxu0 %v1841
        %1860 = vmatprep.subr.bf16.mxu0 0
        %1861 = vmatpush1.bf16.msra.mxu0 %v1842
        %1862 = vmatprep.subr.bf16.mxu0 0
        %1863 = vmatpush1.bf16.msra.mxu0 %v1843
        %1864 = vmatprep.subr.bf16.mxu0 0
        %1865 = vmatpush1.bf16.msra.mxu0 %v1844
        %1866 = vmatprep.subr.bf16.mxu0 0
        %1867 = vmatpush1.bf16.msra.mxu0 %v1845
        %1868 = vmatprep.subr.bf16.mxu0 0
        %1869 = vmatpush1.bf16.msra.mxu0 %v1846
        %1870 = vmatprep.subr.bf16.mxu0 0
        %1871 = vmatpush1.bf16.msra.mxu0 %v1847
        %1872 = vmatprep.subr.bf16.mxu0 0
        %1873 = vmatpush1.bf16.msra.mxu0 0
        %1874 = vmatprep.subr.bf16.mxu0 0
        %1875 = vmatpush1.bf16.msra.mxu0 0
        %1876 = vmatprep.subr.bf16.mxu0 0
        %1877 = vmatpush1.bf16.msra.mxu0 0
        %1878 = vmatprep.subr.bf16.mxu0 0
        %1879 = vmatpush1.bf16.msra.mxu0 0
        %1880 = vmatprep.subr.bf16.mxu0 0
        %1881 = vmatpush1.bf16.msra.mxu0 0
        %1882 = vmatprep.subr.bf16.mxu0 0
        %1883 = vmatpush1.bf16.msra.mxu0 0
        %1884 = vmatprep.subr.bf16.mxu0 0
        %1885 = vmatpush1.bf16.msra.mxu0 0
        %1886 = vmatprep.subr.bf16.mxu0 0
        %1887 = vmatpush1.bf16.msra.mxu0 0
        %1888 = vmatprep.mubr.bf16.mxu0 0
        %1889 = vmatmul.mubr.bf16.gmra.mrb[0].mxu0 %v1780
        %v1890 = vpop.f32.mrb[0].mxu0
        %v1891 = vadd.f32 %v1806, %v1890
        %v1892 = vpop.f32.mrb[0].mxu0
        %v1893 = vpop.f32.mrb[0].mxu0
        %v1894 = vadd.f32 %v1806, %v1893
        %v1895 = vpop.f32.mrb[0].mxu0
        %1896 = vmatprep.mubr.bf16.mxu0 0
        %1897 = vmatmul.mubr.bf16.gmra.mrb[0].mxu0 %v1781
        %v1898 = vpop.f32.mrb[0].mxu0
        %v1899 = vadd.f32 %v1806, %v1898
        %v1900 = vpop.f32.mrb[0].mxu0
        %v1901 = vpop.f32.mrb[0].mxu0
        %v1902 = vadd.f32 %v1806, %v1901
        %v1903 = vpop.f32.mrb[0].mxu0
        %1904 = vmatprep.mubr.bf16.mxu0 0
        %1905 = vmatmul.mubr.bf16.gmra.mrb[0].mxu0 %v1782
        %v1906 = vpop.f32.mrb[0].mxu0
        %v1907 = vadd.f32 %v1806, %v1906
        %v1908 = vpop.f32.mrb[0].mxu0
        %v1909 = vpop.f32.mrb[0].mxu0
        %v1910 = vadd.f32 %v1806, %v1909
        %v1911 = vpop.f32.mrb[0].mxu0
        %1912 = vmatprep.mubr.bf16.mxu0 0
        %1913 = vmatmul.mubr.bf16.gmra.mrb[0].mxu0 %v1783
        %v1914 = vpop.f32.mrb[0].mxu0
        %v1915 = vadd.f32 %v1806, %v1914
        %v1916 = vpop.f32.mrb[0].mxu0
        %v1917 = vpop.f32.mrb[0].mxu0
        %v1918 = vadd.f32 %v1806, %v1917
        %v1919 = vpop.f32.mrb[0].mxu0
        %1920 = vmatprep.mubr.bf16.mxu0 0
        %1921 = vmatmul.mubr.bf16.gmra.mrb[0].mxu0 %v1784
        %v1922 = vpop.f32.mrb[0].mxu0
        %v1923 = vadd.f32 %v1806, %v1922
        %v1924 = vpop.f32.mrb[0].mxu0
        %v1925 = vpop.f32.mrb[0].mxu0
        %v1926 = vadd.f32 %v1806, %v1925
        %v1927 = vpop.f32.mrb[0].mxu0
        %1928 = vdwg.mxu0
        %v1929 = vtanh.pop %v1891
        %v1930 = vtanh.pop %v1894
        %v1931 = vtanh.pop %v1899
        %v1932 = vtanh.pop %v1902
        %v1933 = vtanh.pop %v1907
        %v1934 = vtanh.pop %v1910
        %v1935 = vtanh.pop %v1915
        %v1936 = vtanh.pop %v1918
        %v1937 = vtanh.pop %v1923
        %v1938 = vtanh.pop %v1926
        %v1939 = vpack.c.bf16 %v1930, %v1929
        %v1940 = vpack.c.bf16 %v1932, %v1931
        %v1941 = vpack.c.bf16 %v1934, %v1933
        %v1942 = vpack.c.bf16 %v1936, %v1935
        %v1943 = vpack.c.bf16 %v1938, %v1937
        %v1944 = vld [vmem:[#allocation14] sm:$0xf]
        %v1945 = vld [vmem:[#allocation14 + $0x4] sm:$0xf]
        %v1946 = vld [vmem:[#allocation14 + $0x8] sm:$0xf]
        %v1947 = vld [vmem:[#allocation14 + $0xc] sm:$0xf]
        %v1948 = vld [vmem:[#allocation14 + $0x10] sm:$0xf]
        %v1949 = vld [vmem:[#allocation14 + $0x14] sm:$0xf]
        %v1950 = vld [vmem:[#allocation14 + $0x18] sm:$0xf]
        %v1951 = vld [vmem:[#allocation14 + $0x1c] sm:$0xf]
        %v1952 = vld [vmem:[#allocation14 + $0x20] sm:$0xf]
        %v1953 = vld [vmem:[#allocation14 + $0x24] sm:$0xf]
        %v1954 = vld [vmem:[#allocation14 + $0x28] sm:$0xf]
        %v1955 = vld [vmem:[#allocation14 + $0x2c] sm:$0xf]
        %v1956 = vld [vmem:[#allocation14 + $0x30] sm:$0xf]
        %v1957 = vld [vmem:[#allocation14 + $0x34] sm:$0xf]
        %v1958 = vld [vmem:[#allocation14 + $0x38] sm:$0xf]
        %v1959 = vld [vmem:[#allocation14 + $0x3c] sm:$0xf]
        %v1960 = vld [vmem:[#allocation16] sm:$0x1]
        %v1962 = vlaneseq
        %v1963 = vshrl.u32 %v1962, 7
        %v1964 = vsub.s32 0, %v1963
        %v1965 = vrot.slane %v1960, %v1964
        %v1983 = vunpack.c.l.b16 %v1944
        %v1984 = vunpack.c.l.b16 %v1945
        %v1985 = vunpack.c.l.b16 %v1946
        %v1986 = vunpack.c.l.b16 %v1947
        %v1987 = vunpack.c.l.b16 %v1948
        %v1988 = vunpack.c.l.b16 %v1949
        %v1989 = vunpack.c.l.b16 %v1950
        %v1990 = vunpack.c.l.b16 %v1951
        %v1991 = vunpack.c.l.b16 %v1952
        %v1992 = vunpack.c.l.b16 %v1953
        %v1993 = vunpack.c.l.b16 %v1954
        %v1994 = vunpack.c.l.b16 %v1955
        %v1995 = vunpack.c.l.b16 %v1956
        %v1996 = vunpack.c.l.b16 %v1957
        %v1997 = vunpack.c.l.b16 %v1958
        %v1998 = vunpack.c.l.b16 %v1959
        %v1999 = vpack.c.b16 %v1984, %v1983
        %v2000 = vpack.c.b16 %v1986, %v1985
        %v2001 = vpack.c.b16 %v1988, %v1987
        %v2002 = vpack.c.b16 %v1990, %v1989
        %v2003 = vpack.c.b16 %v1992, %v1991
        %v2004 = vpack.c.b16 %v1994, %v1993
        %v2005 = vpack.c.b16 %v1996, %v1995
        %v2006 = vpack.c.b16 %v1998, %v1997
        %2015 = vmatprep.subr.bf16.mxu0 0
        %2016 = vmatpush1.bf16.msra.mxu0 %v1999
        %2017 = vmatprep.subr.bf16.mxu0 0
        %2018 = vmatpush1.bf16.msra.mxu0 %v2000
        %2019 = vmatprep.subr.bf16.mxu0 0
        %2020 = vmatpush1.bf16.msra.mxu0 %v2001
        %2021 = vmatprep.subr.bf16.mxu0 0
        %2022 = vmatpush1.bf16.msra.mxu0 %v2002
        %2023 = vmatprep.subr.bf16.mxu0 0
        %2024 = vmatpush1.bf16.msra.mxu0 %v2003
        %2025 = vmatprep.subr.bf16.mxu0 0
        %2026 = vmatpush1.bf16.msra.mxu0 %v2004
        %2027 = vmatprep.subr.bf16.mxu0 0
        %2028 = vmatpush1.bf16.msra.mxu0 %v2005
        %2029 = vmatprep.subr.bf16.mxu0 0
        %2030 = vmatpush1.bf16.msra.mxu0 %v2006
        %2031 = vmatprep.subr.bf16.mxu0 0
        %2032 = vmatpush1.bf16.msra.mxu0 0
        %2033 = vmatprep.subr.bf16.mxu0 0
        %2034 = vmatpush1.bf16.msra.mxu0 0
        %2035 = vmatprep.subr.bf16.mxu0 0
        %2036 = vmatpush1.bf16.msra.mxu0 0
        %2037 = vmatprep.subr.bf16.mxu0 0
        %2038 = vmatpush1.bf16.msra.mxu0 0
        %2039 = vmatprep.subr.bf16.mxu0 0
        %2040 = vmatpush1.bf16.msra.mxu0 0
        %2041 = vmatprep.subr.bf16.mxu0 0
        %2042 = vmatpush1.bf16.msra.mxu0 0
        %2043 = vmatprep.subr.bf16.mxu0 0
        %2044 = vmatpush1.bf16.msra.mxu0 0
        %2045 = vmatprep.subr.bf16.mxu0 0
        %2046 = vmatpush1.bf16.msra.mxu0 0
        %2047 = vmatprep.mubr.bf16.mxu0 0
        %2048 = vmatmul.mubr.bf16.gmra.mrb[0].mxu0 %v1939
        %v2049 = vpop.f32.mrb[0].mxu0
        %v2050 = vadd.f32 %v1965, %v2049
        %v2051 = vpop.f32.mrb[0].mxu0
        %v2052 = vpop.f32.mrb[0].mxu0
        %v2053 = vadd.f32 %v1965, %v2052
        %v2054 = vpop.f32.mrb[0].mxu0
        %2055 = vmatprep.mubr.bf16.mxu0 0
        %2056 = vmatmul.mubr.bf16.gmra.mrb[0].mxu0 %v1940
        %v2057 = vpop.f32.mrb[0].mxu0
        %v2058 = vadd.f32 %v1965, %v2057
        %v2059 = vpop.f32.mrb[0].mxu0
        %v2060 = vpop.f32.mrb[0].mxu0
        %v2061 = vadd.f32 %v1965, %v2060
        %v2062 = vpop.f32.mrb[0].mxu0
        %2063 = vmatprep.mubr.bf16.mxu0 0
        %2064 = vmatmul.mubr.bf16.gmra.mrb[0].mxu0 %v1941
        %v2065 = vpop.f32.mrb[0].mxu0
        %v2066 = vadd.f32 %v1965, %v2065
        %v2067 = vpop.f32.mrb[0].mxu0
        %v2068 = vpop.f32.mrb[0].mxu0
        %v2069 = vadd.f32 %v1965, %v2068
        %v2070 = vpop.f32.mrb[0].mxu0
        %2071 = vmatprep.mubr.bf16.mxu0 0
        %2072 = vmatmul.mubr.bf16.gmra.mrb[0].mxu0 %v1942
        %v2073 = vpop.f32.mrb[0].mxu0
        %v2074 = vadd.f32 %v1965, %v2073
        %v2075 = vpop.f32.mrb[0].mxu0
        %v2076 = vpop.f32.mrb[0].mxu0
        %v2077 = vadd.f32 %v1965, %v2076
        %v2078 = vpop.f32.mrb[0].mxu0
        %2079 = vmatprep.mubr.bf16.mxu0 0
        %2080 = vmatmul.mubr.bf16.gmra.mrb[0].mxu0 %v1943
        %v2081 = vpop.f32.mrb[0].mxu0
        %v2082 = vadd.f32 %v1965, %v2081
        %v2083 = vpop.f32.mrb[0].mxu0
        %v2084 = vpop.f32.mrb[0].mxu0
        %v2085 = vadd.f32 %v1965, %v2084
        %v2086 = vpop.f32.mrb[0].mxu0
        %2087 = vdwg.mxu0
        %2088 = vst [vmem:[%s466] sm:$0xff] %v2050
        %2089 = vst [vmem:[%s466 + $0x8] sm:$0xff] %v2053
        %2090 = vst [vmem:[%s466 + $0x10] sm:$0xff] %v2058
        %2091 = vst [vmem:[%s466 + $0x18] sm:$0xff] %v2061
        %2092 = vst [vmem:[%s466 + $0x20] sm:$0xff] %v2066
        %2093 = vst [vmem:[%s466 + $0x28] sm:$0xff] %v2069
        %2094 = vst [vmem:[%s466 + $0x30] sm:$0xff] %v2074
        %2095 = vst [vmem:[%s466 + $0x38] sm:$0xff] %v2077
        %2096 = vst [vmem:[%s466 + $0x40] sm:$0xff] %v2082
        %2097 = vst [vmem:[%s466 + $0x48] sm:$0xff] %v2085
        %s2098 = sand.u32 %s232, 1
        %s2099 = scalar_lea.sflag [#allocation4], %s2098
        %s2100 = sand.u32 %s232, 1
        %s2101 = smul.addr %s2100, 80
        %s2102 = scalar_lea.vmem [#allocation17], %s2101
        // Predicated region
        $region93: #{tpu_custom_call.1} parent=55 // pred_check
          %p2103 = pneg %p242
        $region94: #{tpu_custom_call.1} parent=55 // pred_check_branch
          %2105 = sbr.rel (%p2103) target = $region96
        $region95: #{tpu_custom_call.1} parent=55 // pred_region
          %s2106 = smul.u32 10, %s30
          %s2107 = ssub.s32 38, %s2106
          %p2108 = scmp.lt.s32.totalorder %s2107, 10
          %s2109 = scalar_select %p2108, %s2107, 10
          %s2110 = smul.u32 128, %s2109
          %s2112 = ssub.s32 1280, %s2110
          %2113 = vsyncadd %s2099, %s2112
          %p2114 = scmp.ne.s32.totalorder 0, %s2110
          %s2115 = smul.addr %s2106, 128
          %s2116 = scalar_lea.hbm %s9, %s2115
          %s2117 = smul.u32 8, %s2109
          %s2118 = sshll.u32 %s2102, 4
          %s2119 = int_to_ptr.vmem [resolvable:$true] %s2118
          %s2120 = sshll.u32 %s2117, 4
          %2124 = dma.vmem_to_hbm [thread:$0]  (%p2114), %s2119, %s2120, %s2116, %s2099, 128, 128, 8
        $region96: #{tpu_custom_call.1} parent=55 // pred_fallthru
          _
      $region56: #{tpu_custom_call.1} parent=5 // pred_fallthru
        _
      %p2125 = scmp.le.s32.totalorder 2, %s25
      // Predicated region
      $region97: #{tpu_custom_call.1} parent=5 // pred_check
        %p2126 = pneg %p2125
      $region98: #{tpu_custom_call.1} parent=5 // pred_check_branch
        %2128 = sbr.rel (%p2126) target = $region100
      $region99: #{tpu_custom_call.1} parent=5 // pred_region
        %s2129 = ssub.s32 %s25, 2
        // Predicated region
        $region101: #{tpu_custom_call.1} parent=99 // pred_check
          %p2130 = pneg %p248
        $region102: #{tpu_custom_call.1} parent=99 // pred_check_branch
          %2132 = sbr.rel (%p2130) target = $region104
        $region103: #{tpu_custom_call.1} parent=99 // pred_region
          %s2133 = sand.u32 %s233, 1
          %s2134 = scalar_lea.sflag [#allocation4], %s2133
          %s2135 = sand.u32 %s233, 1
          %s2136 = smul.addr %s2135, 80
          %s2137 = scalar_lea.vmem [#allocation17], %s2136
          %2138 = dma.done %s2134, 1280
        $region104: #{tpu_custom_call.1} parent=99 // pred_fallthru
          _
      $region100: #{tpu_custom_call.1} parent=5 // pred_fallthru
        _
    $region6: #{tpu_custom_call.1} parent=1 // loop_footer
      %s29 = sadd.s32 1, %s25
    $region7: #{tpu_custom_call.1} parent=1 // loop_footer_branch
      %24 = sbr.rel target = $region3
    $region8: #{tpu_custom_call.1} parent=1 // loop_exit
      _
    %2139 = vsyncpa [#allocation3], 1
    %s2140 = scalar_lea.sflag [#allocation3], 1
    %2141 = vsyncpa %s2140, 1
    %2142 = vsyncpa [#allocation6], 1
    %2143 = vsyncpa [#allocation9], 1
    %2144 = vsyncpa [#allocation12], 1
    %2145 = vsyncpa [#allocation15], 1
    %2146 = vsyncpa [#allocation4], 1
    %s2147 = scalar_lea.sflag [#allocation4], 1
    %2148 = vsyncpa %s2147, 1

</llo_original>
